<compile_context>
chip_gen: v6e
topology: v6e:2x2x1
jax: 0.10.0
libtpu: 0.0.40
codegen_flags: <defaults>
</compile_context>

<pallas_src>
import functools

import jax
import jax.numpy as jnp
from jax import lax
from jax.experimental import pallas as pl
from jax.experimental.pallas import tpu as pltpu


# ----------------------------- fused Pallas kernel ----------------------------

def _sgcn_fused_kernel(B, L, H, R, n_layers,
                       h0_ref, adj_ref, featb_ref,
                       fcw_ref, gamma_ref, beta_ref, wcatT_ref, wd_ref,
                       out_ref):
    """All SGCN layers + DistMult decoder; batch folded into the row dimension.

    h0_ref    : (B*L, H)            f32   initial node states (embedding || feature)
    adj_ref   : (R, B*L, B*L)       bf16  block-diagonal relation adjacency
    featb_ref : (n_layers, B*L, H)  f32   precomputed feature @ Wf[l] + b[l]
    fcw_ref   : (n_layers, H, H)    bf16  Linear weight, x-part only
    gamma/beta: (n_layers, 1, H)    f32   LayerNorm affine params
    wcatT_ref : (n_layers, H, (R+1)*H) bf16  columns = [W[-1] | W[0] | ... | W[R-1]]
    wd_ref    : (H, H)              bf16  DistMult relation matrix
    out_ref   : (B*L, L)            f32   sigmoid scores
    """
    x = h0_ref[...]                                          # (B*L, H) f32
    inv = 1.0 / (R + 1)

    for l in range(n_layers):                                # static & tiny -> unrolled
        # fc: cat([x, feature]) @ Wfc + b == x @ Wx + (feature @ Wf + b)
        h = (jnp.dot(x.astype(jnp.bfloat16), fcw_ref[l],
                     preferred_element_type=jnp.float32)
             + featb_ref[l])

        # LayerNorm over hidden dim (eps=1e-5, biased variance; PyTorch default), f32
        mu = jnp.mean(h, axis=-1, keepdims=True)
        var = jnp.mean((h - mu) ** 2, axis=-1, keepdims=True)
        hn = (h - mu) * lax.rsqrt(var + 1e-5) * gamma_ref[l] + beta_ref[l]

        # tanh (EUP); dropout is identity in eval mode
        t = jnp.tanh(hn)
        tb = t.astype(jnp.bfloat16)

        # Lane-dense mixing matmul: (B*L, H) @ (H, (R+1)*H) -> (B*L, 128)
        tw = jnp.dot(tb, wcatT_ref[l], preferred_element_type=jnp.float32)

        # out = t@W[-1] + sum_i adj_i @ (t @ W[i])   (dual of the original form)
        out = tw[:, :H]
        for i in range(R):
            out = out + jnp.dot(
                adj_ref[i],
                tw[:, (i + 1) * H:(i + 2) * H].astype(jnp.bfloat16),
                preferred_element_type=jnp.float32)

        x = out * inv + x                                    # scale + residual (f32)

    # DistMult decoder: sigmoid((x @ Wd) . x^T), per batch block, single output slab.
    xb = x.astype(jnp.bfloat16)
    ew = jnp.dot(xb, wd_ref[...], preferred_element_type=jnp.float32)   # (B*L, H)
    ewb = ew.astype(jnp.bfloat16)
    for b in range(B):                                       # B tiny -> unrolled
        s = lax.dot_general(ewb[b * L:(b + 1) * L], xb[b * L:(b + 1) * L],
                            (((1,), (1,)), ((), ())),
                            preferred_element_type=jnp.float32)         # (L, L)
        out_ref[b * L:(b + 1) * L, :] = jax.nn.sigmoid(s).astype(out_ref.dtype)


# ----------------------------- wrapper ----------------------------------------

def sgcn_forward(params, x_ids, feature, adj):
    B, L = x_ids.shape
    n_layers, H, _ = params["fcw_x"].shape
    R = adj.shape[1]
    BL = B * L

    # Embedding lookup + concat with feature: cheap glue, plain JAX; fold batch.
    embed = jnp.take(params["emb"], x_ids, axis=0)                 # (B, L, H-2)
    h0 = jnp.concatenate([embed, feature], axis=2).reshape(BL, H)  # (B*L, H) f32

    # Feature projection is constant across the layer loop -> hoist out of kernel.
    featb = (jnp.einsum("blf,nfh->nblh", feature, params["fcw_f"])
             + params["fcb"][:, None, :, :]).reshape(n_layers, BL, H)

    # Block-diagonal relation adjacency (R, B*L, B*L), bf16 (0/1 exactly
    # representable): keeps the whole batch as one folded matmul per relation.
    eye_b = jnp.eye(B, dtype=adj.dtype)
    adj_bd = (jnp.einsum("bc,brij->rbicj", eye_b, adj)
              .reshape(R, BL, BL).astype(jnp.bfloat16))

    kernel = functools.partial(_sgcn_fused_kernel, B, L, H, R, n_layers)
    out_flat = pl.pallas_call(
        kernel,
        out_shape=jax.ShapeDtypeStruct((BL, L), jnp.float32),
        grid=(1,),   # single invocation: kernel is launch/step-overhead bound
        in_specs=[
            pl.BlockSpec((BL, H), lambda i: (0, 0)),                        # h0
            pl.BlockSpec((R, BL, BL), lambda i: (0, 0, 0)),                 # adj (block-diag)
            pl.BlockSpec((n_layers, BL, H), lambda i: (0, 0, 0)),           # feature proj
            pl.BlockSpec((n_layers, H, H), lambda i: (0, 0, 0)),            # fc weight (x part)
            pl.BlockSpec((n_layers, 1, H), lambda i: (0, 0, 0)),            # ln gamma
            pl.BlockSpec((n_layers, 1, H), lambda i: (0, 0, 0)),            # ln beta
            pl.BlockSpec((n_layers, H, (R + 1) * H), lambda i: (0, 0, 0)),  # W_catT stack
            pl.BlockSpec((H, H), lambda i: (0, 0)),                         # DistMult Wd
        ],
        out_specs=pl.BlockSpec((BL, L), lambda i: (0, 0)),
        compiler_params=pltpu.CompilerParams(dimension_semantics=("arbitrary",)),
    )(h0, adj_bd, featb,
      params["fcw_x"], params["gamma"], params["beta"],
      params["WcatT"], params["distmult_W"])

    return out_flat.reshape(B, L, L)


# ----------------------------- parameter init ---------------------------------

def init_params(key, max_number, hidden_dim, label_num, gcn_layer):
    H, R = hidden_dim, label_num
    keys = jax.random.split(key, 2 + gcn_layer)

    # Embedding(max_number, H-2, padding_idx=0): zero out row 0.
    emb = jax.random.normal(keys[0], (max_number, H - 2), jnp.float32)
    emb = emb.at[0].set(0.0)

    fcw_x, fcw_f, fcb, WcatT = [], [], [], []
    for l in range(gcn_layer):
        k = jax.random.split(keys[2 + l], 3)
        # nn.Linear(H+2, H): weight is (H, H+2) in torch; store transposed & split.
        bound = 1.0 / jnp.sqrt(H + 2.0)
        fc_w = jax.random.uniform(k[0], (H + 2, H), jnp.float32, -bound, bound)
        fc_b = jax.random.uniform(k[1], (1, H), jnp.float32, -bound, bound)
        # xavier_uniform for W stack (R+1, H, H)
        xb = jnp.sqrt(6.0 / (H + H))
        W = jax.random.uniform(k[2], (R + 1, H, H), jnp.float32, -xb, xb)
        fcw_x.append(fc_w[:H, :])
        fcw_f.append(fc_w[H:, :])
        fcb.append(fc_b)
        # Lane-concatenated mixing weight: [W[-1] | W[0] | ... | W[R-1]] -> (H, (R+1)*H)
        WcatT.append(jnp.concatenate([W[R]] + [W[i] for i in range(R)], axis=1))

    xb = jnp.sqrt(6.0 / (H + H))
    distmult_W = jax.random.uniform(keys[1], (H, H), jnp.float32, -xb, xb)

    n = gcn_layer
    return {
        "emb": emb,
        "fcw_x": jnp.stack(fcw_x).astype(jnp.bfloat16),   # (n, H, H)
        "fcw_f": jnp.stack(fcw_f),                        # (n, 2, H) f32 (wrapper einsum)
        "fcb": jnp.stack(fcb),                            # (n, 1, H)
        "gamma": jnp.ones((n, 1, H), jnp.float32),
        "beta": jnp.zeros((n, 1, H), jnp.float32),
        "WcatT": jnp.stack(WcatT).astype(jnp.bfloat16),   # (n, H, (R+1)*H)
        "distmult_W": distmult_W.astype(jnp.bfloat16),    # (H, H)
    }


# ----------------------------- main -------------------------------------------

if __name__ == "__main__":
    max_number = 16     # number of nodes L (and embedding vocab size)
    hidden_dim = 32
    label_num = 3
    gcn_layer = 3
    bsz = 2

    root = jax.random.PRNGKey(0)
    kp, kx, kf, ka = jax.random.split(root, 4)

    params = init_params(kp, max_number, hidden_dim, label_num, gcn_layer)

    x_ids = jax.random.randint(kx, (bsz, max_number), 0, max_number, jnp.int32)
    feature = jax.random.normal(kf, (bsz, max_number, 2), jnp.float32)
    adj = (jax.random.uniform(ka, (bsz, label_num, max_number, max_number),
                              jnp.float32) > 0.7).astype(jnp.float32)

    out = jax.jit(sgcn_forward)(params, x_ids, feature, adj)
    jax.block_until_ready(out)

    assert out.shape == (bsz, max_number, max_number), out.shape
    assert bool(jnp.all(jnp.isfinite(out)))
    print("KERNEL_OK")
</pallas_src>

<mosaic_0001>
module attributes {stable_mosaic.version = 11 : i64} {
  func.func @_sgcn_fused_kernel(%arg0: i32, %arg1: memref<32x32xf32, #tpu.memory_space<vmem>>, %arg2: memref<3x32x32xbf16, #tpu.memory_space<vmem>>, %arg3: memref<3x32x32xf32, #tpu.memory_space<vmem>>, %arg4: memref<3x32x32xbf16, #tpu.memory_space<vmem>>, %arg5: memref<3x1x32xf32, #tpu.memory_space<vmem>>, %arg6: memref<3x1x32xf32, #tpu.memory_space<vmem>>, %arg7: memref<3x32x128xbf16, #tpu.memory_space<vmem>>, %arg8: memref<32x32xbf16, #tpu.memory_space<vmem>>, %arg9: memref<32x16xf32, #tpu.memory_space<vmem>>) attributes {dimension_semantics = [#tpu.dimension_semantics<arbitrary>], iteration_bounds = array<i64: 1>, scalar_prefetch = 0 : i64, scratch_operands = 0 : i64, tpu.core_type = #tpu.core_type<tc>, window_params = [{pipeline_mode = #tpu.pipeline_mode<synchronous>, transform_indices = @transform_0, window_bounds = array<i64: 32, 32>}, {pipeline_mode = #tpu.pipeline_mode<synchronous>, transform_indices = @transform_1, window_bounds = array<i64: 3, 32, 32>}, {pipeline_mode = #tpu.pipeline_mode<synchronous>, transform_indices = @transform_2, window_bounds = array<i64: 3, 32, 32>}, {pipeline_mode = #tpu.pipeline_mode<synchronous>, transform_indices = @transform_3, window_bounds = array<i64: 3, 32, 32>}, {pipeline_mode = #tpu.pipeline_mode<synchronous>, transform_indices = @transform_4, window_bounds = array<i64: 3, 1, 32>}, {pipeline_mode = #tpu.pipeline_mode<synchronous>, transform_indices = @transform_5, window_bounds = array<i64: 3, 1, 32>}, {pipeline_mode = #tpu.pipeline_mode<synchronous>, transform_indices = @transform_6, window_bounds = array<i64: 3, 32, 128>}, {pipeline_mode = #tpu.pipeline_mode<synchronous>, transform_indices = @transform_7, window_bounds = array<i64: 32, 32>}, {pipeline_mode = #tpu.pipeline_mode<synchronous>, transform_indices = @transform_8, window_bounds = array<i64: 32, 16>}]} {
    %c0 = arith.constant 0 : index
    %c0_0 = arith.constant 0 : index
    %0 = vector.load %arg1[%c0, %c0_0] : memref<32x32xf32, #tpu.memory_space<vmem>>, vector<32x32xf32>
    %1 = arith.truncf %0 : vector<32x32xf32> to vector<32x32xbf16>
    %c0_1 = arith.constant 0 : index
    %c0_2 = arith.constant 0 : index
    %c0_3 = arith.constant 0 : index
    %2 = vector.load %arg4[%c0_1, %c0_2, %c0_3] : memref<3x32x32xbf16, #tpu.memory_space<vmem>>, vector<1x32x32xbf16>
    %3 = vector.shape_cast %2 : vector<1x32x32xbf16> to vector<32x32xbf16>
    %cst = arith.constant dense<0.000000e+00> : vector<32x32xf32>
    %4 = tpu.matmul %1, %3, %cst {dimension_numbers = #tpu.dot_dimension_numbers<[1], [0], [0], [1], [0, 0, 1, 1], [], []>} : vector<32x32xbf16>, vector<32x32xbf16>, vector<32x32xf32> -> vector<32x32xf32>
    %c0_4 = arith.constant 0 : index
    %c0_5 = arith.constant 0 : index
    %c0_6 = arith.constant 0 : index
    %5 = vector.load %arg3[%c0_4, %c0_5, %c0_6] : memref<3x32x32xf32, #tpu.memory_space<vmem>>, vector<1x32x32xf32>
    %6 = vector.shape_cast %5 : vector<1x32x32xf32> to vector<32x32xf32>
    %7 = arith.addf %4, %6 : vector<32x32xf32>
    %cst_7 = arith.constant dense<0.000000e+00> : vector<32xf32>
    %8 = vector.multi_reduction <add>, %7, %cst_7 [1] : vector<32x32xf32> to vector<32xf32>
    %9 = vector.shape_cast %8 : vector<32xf32> to vector<32x1xf32>
    %cst_8 = arith.constant 3.200000e+01 : f32
    %10 = vector.broadcast %cst_8 : f32 to vector<32x1xf32>
    %11 = arith.divf %9, %10 : vector<32x1xf32>
    %12 = vector.broadcast %11 : vector<32x1xf32> to vector<32x32xf32>
    %13 = arith.subf %7, %12 : vector<32x32xf32>
    %14 = arith.mulf %13, %13 : vector<32x32xf32>
    %cst_9 = arith.constant dense<0.000000e+00> : vector<32xf32>
    %15 = vector.multi_reduction <add>, %14, %cst_9 [1] : vector<32x32xf32> to vector<32xf32>
    %16 = vector.shape_cast %15 : vector<32xf32> to vector<32x1xf32>
    %cst_10 = arith.constant 3.200000e+01 : f32
    %17 = vector.broadcast %cst_10 : f32 to vector<32x1xf32>
    %18 = arith.divf %16, %17 : vector<32x1xf32>
    %19 = vector.broadcast %11 : vector<32x1xf32> to vector<32x32xf32>
    %20 = arith.subf %7, %19 : vector<32x32xf32>
    %cst_11 = arith.constant 9.99999974E-6 : f32
    %21 = vector.broadcast %cst_11 : f32 to vector<32x1xf32>
    %22 = arith.addf %18, %21 : vector<32x1xf32>
    %23 = math.rsqrt %22 : vector<32x1xf32>
    %24 = vector.broadcast %23 : vector<32x1xf32> to vector<32x32xf32>
    %25 = arith.mulf %20, %24 : vector<32x32xf32>
    %c0_12 = arith.constant 0 : index
    %c0_13 = arith.constant 0 : index
    %c0_14 = arith.constant 0 : index
    %26 = vector.load %arg5[%c0_12, %c0_13, %c0_14] : memref<3x1x32xf32, #tpu.memory_space<vmem>>, vector<1x1x32xf32>
    %27 = vector.shape_cast %26 : vector<1x1x32xf32> to vector<1x32xf32>
    %28 = vector.broadcast %27 : vector<1x32xf32> to vector<32x32xf32>
    %29 = arith.mulf %25, %28 : vector<32x32xf32>
    %c0_15 = arith.constant 0 : index
    %c0_16 = arith.constant 0 : index
    %c0_17 = arith.constant 0 : index
    %30 = vector.load %arg6[%c0_15, %c0_16, %c0_17] : memref<3x1x32xf32, #tpu.memory_space<vmem>>, vector<1x1x32xf32>
    %31 = vector.shape_cast %30 : vector<1x1x32xf32> to vector<1x32xf32>
    %32 = vector.broadcast %31 : vector<1x32xf32> to vector<32x32xf32>
    %33 = arith.addf %29, %32 : vector<32x32xf32>
    %34 = math.tanh %33 : vector<32x32xf32>
    %35 = arith.truncf %34 : vector<32x32xf32> to vector<32x32xbf16>
    %c0_18 = arith.constant 0 : index
    %c0_19 = arith.constant 0 : index
    %c0_20 = arith.constant 0 : index
    %36 = vector.load %arg7[%c0_18, %c0_19, %c0_20] : memref<3x32x128xbf16, #tpu.memory_space<vmem>>, vector<1x32x128xbf16>
    %37 = vector.shape_cast %36 : vector<1x32x128xbf16> to vector<32x128xbf16>
    %cst_21 = arith.constant dense<0.000000e+00> : vector<32x128xf32>
    %38 = tpu.matmul %35, %37, %cst_21 {dimension_numbers = #tpu.dot_dimension_numbers<[1], [0], [0], [1], [0, 0, 1, 1], [], []>} : vector<32x32xbf16>, vector<32x128xbf16>, vector<32x128xf32> -> vector<32x128xf32>
    %39 = vector.extract_strided_slice %38 {offsets = [0, 0], sizes = [32, 32], strides = [1, 1]} : vector<32x128xf32> to vector<32x32xf32>
    %c0_22 = arith.constant 0 : index
    %c0_23 = arith.constant 0 : index
    %c0_24 = arith.constant 0 : index
    %40 = vector.load %arg2[%c0_22, %c0_23, %c0_24] : memref<3x32x32xbf16, #tpu.memory_space<vmem>>, vector<1x32x32xbf16>
    %41 = vector.shape_cast %40 : vector<1x32x32xbf16> to vector<32x32xbf16>
    %42 = vector.extract_strided_slice %38 {offsets = [0, 32], sizes = [32, 32], strides = [1, 1]} : vector<32x128xf32> to vector<32x32xf32>
    %43 = arith.truncf %42 : vector<32x32xf32> to vector<32x32xbf16>
    %cst_25 = arith.constant dense<0.000000e+00> : vector<32x32xf32>
    %44 = tpu.matmul %41, %43, %cst_25 {dimension_numbers = #tpu.dot_dimension_numbers<[1], [0], [0], [1], [0, 0, 1, 1], [], []>} : vector<32x32xbf16>, vector<32x32xbf16>, vector<32x32xf32> -> vector<32x32xf32>
    %45 = arith.addf %39, %44 : vector<32x32xf32>
    %c1 = arith.constant 1 : index
    %c0_26 = arith.constant 0 : index
    %c0_27 = arith.constant 0 : index
    %46 = vector.load %arg2[%c1, %c0_26, %c0_27] : memref<3x32x32xbf16, #tpu.memory_space<vmem>>, vector<1x32x32xbf16>
    %47 = vector.shape_cast %46 : vector<1x32x32xbf16> to vector<32x32xbf16>
    %48 = vector.extract_strided_slice %38 {offsets = [0, 64], sizes = [32, 32], strides = [1, 1]} : vector<32x128xf32> to vector<32x32xf32>
    %49 = arith.truncf %48 : vector<32x32xf32> to vector<32x32xbf16>
    %cst_28 = arith.constant dense<0.000000e+00> : vector<32x32xf32>
    %50 = tpu.matmul %47, %49, %cst_28 {dimension_numbers = #tpu.dot_dimension_numbers<[1], [0], [0], [1], [0, 0, 1, 1], [], []>} : vector<32x32xbf16>, vector<32x32xbf16>, vector<32x32xf32> -> vector<32x32xf32>
    %51 = arith.addf %45, %50 : vector<32x32xf32>
    %c2 = arith.constant 2 : index
    %c0_29 = arith.constant 0 : index
    %c0_30 = arith.constant 0 : index
    %52 = vector.load %arg2[%c2, %c0_29, %c0_30] : memref<3x32x32xbf16, #tpu.memory_space<vmem>>, vector<1x32x32xbf16>
    %53 = vector.shape_cast %52 : vector<1x32x32xbf16> to vector<32x32xbf16>
    %54 = vector.extract_strided_slice %38 {offsets = [0, 96], sizes = [32, 32], strides = [1, 1]} : vector<32x128xf32> to vector<32x32xf32>
    %55 = arith.truncf %54 : vector<32x32xf32> to vector<32x32xbf16>
    %cst_31 = arith.constant dense<0.000000e+00> : vector<32x32xf32>
    %56 = tpu.matmul %53, %55, %cst_31 {dimension_numbers = #tpu.dot_dimension_numbers<[1], [0], [0], [1], [0, 0, 1, 1], [], []>} : vector<32x32xbf16>, vector<32x32xbf16>, vector<32x32xf32> -> vector<32x32xf32>
    %57 = arith.addf %51, %56 : vector<32x32xf32>
    %cst_32 = arith.constant 2.500000e-01 : f32
    %58 = vector.broadcast %cst_32 : f32 to vector<32x32xf32>
    %59 = arith.mulf %57, %58 : vector<32x32xf32>
    %60 = arith.addf %59, %0 : vector<32x32xf32>
    %61 = arith.truncf %60 : vector<32x32xf32> to vector<32x32xbf16>
    %c1_33 = arith.constant 1 : index
    %c0_34 = arith.constant 0 : index
    %c0_35 = arith.constant 0 : index
    %62 = vector.load %arg4[%c1_33, %c0_34, %c0_35] : memref<3x32x32xbf16, #tpu.memory_space<vmem>>, vector<1x32x32xbf16>
    %63 = vector.shape_cast %62 : vector<1x32x32xbf16> to vector<32x32xbf16>
    %cst_36 = arith.constant dense<0.000000e+00> : vector<32x32xf32>
    %64 = tpu.matmul %61, %63, %cst_36 {dimension_numbers = #tpu.dot_dimension_numbers<[1], [0], [0], [1], [0, 0, 1, 1], [], []>} : vector<32x32xbf16>, vector<32x32xbf16>, vector<32x32xf32> -> vector<32x32xf32>
    %c1_37 = arith.constant 1 : index
    %c0_38 = arith.constant 0 : index
    %c0_39 = arith.constant 0 : index
    %65 = vector.load %arg3[%c1_37, %c0_38, %c0_39] : memref<3x32x32xf32, #tpu.memory_space<vmem>>, vector<1x32x32xf32>
    %66 = vector.shape_cast %65 : vector<1x32x32xf32> to vector<32x32xf32>
    %67 = arith.addf %64, %66 : vector<32x32xf32>
    %cst_40 = arith.constant dense<0.000000e+00> : vector<32xf32>
    %68 = vector.multi_reduction <add>, %67, %cst_40 [1] : vector<32x32xf32> to vector<32xf32>
    %69 = vector.shape_cast %68 : vector<32xf32> to vector<32x1xf32>
    %cst_41 = arith.constant 3.200000e+01 : f32
    %70 = vector.broadcast %cst_41 : f32 to vector<32x1xf32>
    %71 = arith.divf %69, %70 : vector<32x1xf32>
    %72 = vector.broadcast %71 : vector<32x1xf32> to vector<32x32xf32>
    %73 = arith.subf %67, %72 : vector<32x32xf32>
    %74 = arith.mulf %73, %73 : vector<32x32xf32>
    %cst_42 = arith.constant dense<0.000000e+00> : vector<32xf32>
    %75 = vector.multi_reduction <add>, %74, %cst_42 [1] : vector<32x32xf32> to vector<32xf32>
    %76 = vector.shape_cast %75 : vector<32xf32> to vector<32x1xf32>
    %cst_43 = arith.constant 3.200000e+01 : f32
    %77 = vector.broadcast %cst_43 : f32 to vector<32x1xf32>
    %78 = arith.divf %76, %77 : vector<32x1xf32>
    %79 = vector.broadcast %71 : vector<32x1xf32> to vector<32x32xf32>
    %80 = arith.subf %67, %79 : vector<32x32xf32>
    %cst_44 = arith.constant 9.99999974E-6 : f32
    %81 = vector.broadcast %cst_44 : f32 to vector<32x1xf32>
    %82 = arith.addf %78, %81 : vector<32x1xf32>
    %83 = math.rsqrt %82 : vector<32x1xf32>
    %84 = vector.broadcast %83 : vector<32x1xf32> to vector<32x32xf32>
    %85 = arith.mulf %80, %84 : vector<32x32xf32>
    %c1_45 = arith.constant 1 : index
    %c0_46 = arith.constant 0 : index
    %c0_47 = arith.constant 0 : index
    %86 = vector.load %arg5[%c1_45, %c0_46, %c0_47] : memref<3x1x32xf32, #tpu.memory_space<vmem>>, vector<1x1x32xf32>
    %87 = vector.shape_cast %86 : vector<1x1x32xf32> to vector<1x32xf32>
    %88 = vector.broadcast %87 : vector<1x32xf32> to vector<32x32xf32>
    %89 = arith.mulf %85, %88 : vector<32x32xf32>
    %c1_48 = arith.constant 1 : index
    %c0_49 = arith.constant 0 : index
    %c0_50 = arith.constant 0 : index
    %90 = vector.load %arg6[%c1_48, %c0_49, %c0_50] : memref<3x1x32xf32, #tpu.memory_space<vmem>>, vector<1x1x32xf32>
    %91 = vector.shape_cast %90 : vector<1x1x32xf32> to vector<1x32xf32>
    %92 = vector.broadcast %91 : vector<1x32xf32> to vector<32x32xf32>
    %93 = arith.addf %89, %92 : vector<32x32xf32>
    %94 = math.tanh %93 : vector<32x32xf32>
    %95 = arith.truncf %94 : vector<32x32xf32> to vector<32x32xbf16>
    %c1_51 = arith.constant 1 : index
    %c0_52 = arith.constant 0 : index
    %c0_53 = arith.constant 0 : index
    %96 = vector.load %arg7[%c1_51, %c0_52, %c0_53] : memref<3x32x128xbf16, #tpu.memory_space<vmem>>, vector<1x32x128xbf16>
    %97 = vector.shape_cast %96 : vector<1x32x128xbf16> to vector<32x128xbf16>
    %cst_54 = arith.constant dense<0.000000e+00> : vector<32x128xf32>
    %98 = tpu.matmul %95, %97, %cst_54 {dimension_numbers = #tpu.dot_dimension_numbers<[1], [0], [0], [1], [0, 0, 1, 1], [], []>} : vector<32x32xbf16>, vector<32x128xbf16>, vector<32x128xf32> -> vector<32x128xf32>
    %99 = vector.extract_strided_slice %98 {offsets = [0, 0], sizes = [32, 32], strides = [1, 1]} : vector<32x128xf32> to vector<32x32xf32>
    %c0_55 = arith.constant 0 : index
    %c0_56 = arith.constant 0 : index
    %c0_57 = arith.constant 0 : index
    %100 = vector.load %arg2[%c0_55, %c0_56, %c0_57] : memref<3x32x32xbf16, #tpu.memory_space<vmem>>, vector<1x32x32xbf16>
    %101 = vector.shape_cast %100 : vector<1x32x32xbf16> to vector<32x32xbf16>
    %102 = vector.extract_strided_slice %98 {offsets = [0, 32], sizes = [32, 32], strides = [1, 1]} : vector<32x128xf32> to vector<32x32xf32>
    %103 = arith.truncf %102 : vector<32x32xf32> to vector<32x32xbf16>
    %cst_58 = arith.constant dense<0.000000e+00> : vector<32x32xf32>
    %104 = tpu.matmul %101, %103, %cst_58 {dimension_numbers = #tpu.dot_dimension_numbers<[1], [0], [0], [1], [0, 0, 1, 1], [], []>} : vector<32x32xbf16>, vector<32x32xbf16>, vector<32x32xf32> -> vector<32x32xf32>
    %105 = arith.addf %99, %104 : vector<32x32xf32>
    %c1_59 = arith.constant 1 : index
    %c0_60 = arith.constant 0 : index
    %c0_61 = arith.constant 0 : index
    %106 = vector.load %arg2[%c1_59, %c0_60, %c0_61] : memref<3x32x32xbf16, #tpu.memory_space<vmem>>, vector<1x32x32xbf16>
    %107 = vector.shape_cast %106 : vector<1x32x32xbf16> to vector<32x32xbf16>
    %108 = vector.extract_strided_slice %98 {offsets = [0, 64], sizes = [32, 32], strides = [1, 1]} : vector<32x128xf32> to vector<32x32xf32>
    %109 = arith.truncf %108 : vector<32x32xf32> to vector<32x32xbf16>
    %cst_62 = arith.constant dense<0.000000e+00> : vector<32x32xf32>
    %110 = tpu.matmul %107, %109, %cst_62 {dimension_numbers = #tpu.dot_dimension_numbers<[1], [0], [0], [1], [0, 0, 1, 1], [], []>} : vector<32x32xbf16>, vector<32x32xbf16>, vector<32x32xf32> -> vector<32x32xf32>
    %111 = arith.addf %105, %110 : vector<32x32xf32>
    %c2_63 = arith.constant 2 : index
    %c0_64 = arith.constant 0 : index
    %c0_65 = arith.constant 0 : index
    %112 = vector.load %arg2[%c2_63, %c0_64, %c0_65] : memref<3x32x32xbf16, #tpu.memory_space<vmem>>, vector<1x32x32xbf16>
    %113 = vector.shape_cast %112 : vector<1x32x32xbf16> to vector<32x32xbf16>
    %114 = vector.extract_strided_slice %98 {offsets = [0, 96], sizes = [32, 32], strides = [1, 1]} : vector<32x128xf32> to vector<32x32xf32>
    %115 = arith.truncf %114 : vector<32x32xf32> to vector<32x32xbf16>
    %cst_66 = arith.constant dense<0.000000e+00> : vector<32x32xf32>
    %116 = tpu.matmul %113, %115, %cst_66 {dimension_numbers = #tpu.dot_dimension_numbers<[1], [0], [0], [1], [0, 0, 1, 1], [], []>} : vector<32x32xbf16>, vector<32x32xbf16>, vector<32x32xf32> -> vector<32x32xf32>
    %117 = arith.addf %111, %116 : vector<32x32xf32>
    %cst_67 = arith.constant 2.500000e-01 : f32
    %118 = vector.broadcast %cst_67 : f32 to vector<32x32xf32>
    %119 = arith.mulf %117, %118 : vector<32x32xf32>
    %120 = arith.addf %119, %60 : vector<32x32xf32>
    %121 = arith.truncf %120 : vector<32x32xf32> to vector<32x32xbf16>
    %c2_68 = arith.constant 2 : index
    %c0_69 = arith.constant 0 : index
    %c0_70 = arith.constant 0 : index
    %122 = vector.load %arg4[%c2_68, %c0_69, %c0_70] : memref<3x32x32xbf16, #tpu.memory_space<vmem>>, vector<1x32x32xbf16>
    %123 = vector.shape_cast %122 : vector<1x32x32xbf16> to vector<32x32xbf16>
    %cst_71 = arith.constant dense<0.000000e+00> : vector<32x32xf32>
    %124 = tpu.matmul %121, %123, %cst_71 {dimension_numbers = #tpu.dot_dimension_numbers<[1], [0], [0], [1], [0, 0, 1, 1], [], []>} : vector<32x32xbf16>, vector<32x32xbf16>, vector<32x32xf32> -> vector<32x32xf32>
    %c2_72 = arith.constant 2 : index
    %c0_73 = arith.constant 0 : index
    %c0_74 = arith.constant 0 : index
    %125 = vector.load %arg3[%c2_72, %c0_73, %c0_74] : memref<3x32x32xf32, #tpu.memory_space<vmem>>, vector<1x32x32xf32>
    %126 = vector.shape_cast %125 : vector<1x32x32xf32> to vector<32x32xf32>
    %127 = arith.addf %124, %126 : vector<32x32xf32>
    %cst_75 = arith.constant dense<0.000000e+00> : vector<32xf32>
    %128 = vector.multi_reduction <add>, %127, %cst_75 [1] : vector<32x32xf32> to vector<32xf32>
    %129 = vector.shape_cast %128 : vector<32xf32> to vector<32x1xf32>
    %cst_76 = arith.constant 3.200000e+01 : f32
    %130 = vector.broadcast %cst_76 : f32 to vector<32x1xf32>
    %131 = arith.divf %129, %130 : vector<32x1xf32>
    %132 = vector.broadcast %131 : vector<32x1xf32> to vector<32x32xf32>
    %133 = arith.subf %127, %132 : vector<32x32xf32>
    %134 = arith.mulf %133, %133 : vector<32x32xf32>
    %cst_77 = arith.constant dense<0.000000e+00> : vector<32xf32>
    %135 = vector.multi_reduction <add>, %134, %cst_77 [1] : vector<32x32xf32> to vector<32xf32>
    %136 = vector.shape_cast %135 : vector<32xf32> to vector<32x1xf32>
    %cst_78 = arith.constant 3.200000e+01 : f32
    %137 = vector.broadcast %cst_78 : f32 to vector<32x1xf32>
    %138 = arith.divf %136, %137 : vector<32x1xf32>
    %139 = vector.broadcast %131 : vector<32x1xf32> to vector<32x32xf32>
    %140 = arith.subf %127, %139 : vector<32x32xf32>
    %cst_79 = arith.constant 9.99999974E-6 : f32
    %141 = vector.broadcast %cst_79 : f32 to vector<32x1xf32>
    %142 = arith.addf %138, %141 : vector<32x1xf32>
    %143 = math.rsqrt %142 : vector<32x1xf32>
    %144 = vector.broadcast %143 : vector<32x1xf32> to vector<32x32xf32>
    %145 = arith.mulf %140, %144 : vector<32x32xf32>
    %c2_80 = arith.constant 2 : index
    %c0_81 = arith.constant 0 : index
    %c0_82 = arith.constant 0 : index
    %146 = vector.load %arg5[%c2_80, %c0_81, %c0_82] : memref<3x1x32xf32, #tpu.memory_space<vmem>>, vector<1x1x32xf32>
    %147 = vector.shape_cast %146 : vector<1x1x32xf32> to vector<1x32xf32>
    %148 = vector.broadcast %147 : vector<1x32xf32> to vector<32x32xf32>
    %149 = arith.mulf %145, %148 : vector<32x32xf32>
    %c2_83 = arith.constant 2 : index
    %c0_84 = arith.constant 0 : index
    %c0_85 = arith.constant 0 : index
    %150 = vector.load %arg6[%c2_83, %c0_84, %c0_85] : memref<3x1x32xf32, #tpu.memory_space<vmem>>, vector<1x1x32xf32>
    %151 = vector.shape_cast %150 : vector<1x1x32xf32> to vector<1x32xf32>
    %152 = vector.broadcast %151 : vector<1x32xf32> to vector<32x32xf32>
    %153 = arith.addf %149, %152 : vector<32x32xf32>
    %154 = math.tanh %153 : vector<32x32xf32>
    %155 = arith.truncf %154 : vector<32x32xf32> to vector<32x32xbf16>
    %c2_86 = arith.constant 2 : index
    %c0_87 = arith.constant 0 : index
    %c0_88 = arith.constant 0 : index
    %156 = vector.load %arg7[%c2_86, %c0_87, %c0_88] : memref<3x32x128xbf16, #tpu.memory_space<vmem>>, vector<1x32x128xbf16>
    %157 = vector.shape_cast %156 : vector<1x32x128xbf16> to vector<32x128xbf16>
    %cst_89 = arith.constant dense<0.000000e+00> : vector<32x128xf32>
    %158 = tpu.matmul %155, %157, %cst_89 {dimension_numbers = #tpu.dot_dimension_numbers<[1], [0], [0], [1], [0, 0, 1, 1], [], []>} : vector<32x32xbf16>, vector<32x128xbf16>, vector<32x128xf32> -> vector<32x128xf32>
    %159 = vector.extract_strided_slice %158 {offsets = [0, 0], sizes = [32, 32], strides = [1, 1]} : vector<32x128xf32> to vector<32x32xf32>
    %c0_90 = arith.constant 0 : index
    %c0_91 = arith.constant 0 : index
    %c0_92 = arith.constant 0 : index
    %160 = vector.load %arg2[%c0_90, %c0_91, %c0_92] : memref<3x32x32xbf16, #tpu.memory_space<vmem>>, vector<1x32x32xbf16>
    %161 = vector.shape_cast %160 : vector<1x32x32xbf16> to vector<32x32xbf16>
    %162 = vector.extract_strided_slice %158 {offsets = [0, 32], sizes = [32, 32], strides = [1, 1]} : vector<32x128xf32> to vector<32x32xf32>
    %163 = arith.truncf %162 : vector<32x32xf32> to vector<32x32xbf16>
    %cst_93 = arith.constant dense<0.000000e+00> : vector<32x32xf32>
    %164 = tpu.matmul %161, %163, %cst_93 {dimension_numbers = #tpu.dot_dimension_numbers<[1], [0], [0], [1], [0, 0, 1, 1], [], []>} : vector<32x32xbf16>, vector<32x32xbf16>, vector<32x32xf32> -> vector<32x32xf32>
    %165 = arith.addf %159, %164 : vector<32x32xf32>
    %c1_94 = arith.constant 1 : index
    %c0_95 = arith.constant 0 : index
    %c0_96 = arith.constant 0 : index
    %166 = vector.load %arg2[%c1_94, %c0_95, %c0_96] : memref<3x32x32xbf16, #tpu.memory_space<vmem>>, vector<1x32x32xbf16>
    %167 = vector.shape_cast %166 : vector<1x32x32xbf16> to vector<32x32xbf16>
    %168 = vector.extract_strided_slice %158 {offsets = [0, 64], sizes = [32, 32], strides = [1, 1]} : vector<32x128xf32> to vector<32x32xf32>
    %169 = arith.truncf %168 : vector<32x32xf32> to vector<32x32xbf16>
    %cst_97 = arith.constant dense<0.000000e+00> : vector<32x32xf32>
    %170 = tpu.matmul %167, %169, %cst_97 {dimension_numbers = #tpu.dot_dimension_numbers<[1], [0], [0], [1], [0, 0, 1, 1], [], []>} : vector<32x32xbf16>, vector<32x32xbf16>, vector<32x32xf32> -> vector<32x32xf32>
    %171 = arith.addf %165, %170 : vector<32x32xf32>
    %c2_98 = arith.constant 2 : index
    %c0_99 = arith.constant 0 : index
    %c0_100 = arith.constant 0 : index
    %172 = vector.load %arg2[%c2_98, %c0_99, %c0_100] : memref<3x32x32xbf16, #tpu.memory_space<vmem>>, vector<1x32x32xbf16>
    %173 = vector.shape_cast %172 : vector<1x32x32xbf16> to vector<32x32xbf16>
    %174 = vector.extract_strided_slice %158 {offsets = [0, 96], sizes = [32, 32], strides = [1, 1]} : vector<32x128xf32> to vector<32x32xf32>
    %175 = arith.truncf %174 : vector<32x32xf32> to vector<32x32xbf16>
    %cst_101 = arith.constant dense<0.000000e+00> : vector<32x32xf32>
    %176 = tpu.matmul %173, %175, %cst_101 {dimension_numbers = #tpu.dot_dimension_numbers<[1], [0], [0], [1], [0, 0, 1, 1], [], []>} : vector<32x32xbf16>, vector<32x32xbf16>, vector<32x32xf32> -> vector<32x32xf32>
    %177 = arith.addf %171, %176 : vector<32x32xf32>
    %cst_102 = arith.constant 2.500000e-01 : f32
    %178 = vector.broadcast %cst_102 : f32 to vector<32x32xf32>
    %179 = arith.mulf %177, %178 : vector<32x32xf32>
    %180 = arith.addf %179, %120 : vector<32x32xf32>
    %181 = arith.truncf %180 : vector<32x32xf32> to vector<32x32xbf16>
    %c0_103 = arith.constant 0 : index
    %c0_104 = arith.constant 0 : index
    %182 = vector.load %arg8[%c0_103, %c0_104] : memref<32x32xbf16, #tpu.memory_space<vmem>>, vector<32x32xbf16>
    %cst_105 = arith.constant dense<0.000000e+00> : vector<32x32xf32>
    %183 = tpu.matmul %181, %182, %cst_105 {dimension_numbers = #tpu.dot_dimension_numbers<[1], [0], [0], [1], [0, 0, 1, 1], [], []>} : vector<32x32xbf16>, vector<32x32xbf16>, vector<32x32xf32> -> vector<32x32xf32>
    %184 = arith.truncf %183 : vector<32x32xf32> to vector<32x32xbf16>
    %185 = vector.extract_strided_slice %184 {offsets = [0, 0], sizes = [16, 32], strides = [1, 1]} : vector<32x32xbf16> to vector<16x32xbf16>
    %186 = vector.extract_strided_slice %181 {offsets = [0, 0], sizes = [16, 32], strides = [1, 1]} : vector<32x32xbf16> to vector<16x32xbf16>
    %cst_106 = arith.constant dense<0.000000e+00> : vector<16x16xf32>
    %187 = tpu.matmul %185, %186, %cst_106 {dimension_numbers = #tpu.dot_dimension_numbers<[1], [1], [0], [0], [0, 0, 1, 0], [], []>} : vector<16x32xbf16>, vector<16x32xbf16>, vector<16x16xf32> -> vector<16x16xf32>
    %188 = arith.negf %187 : vector<16x16xf32>
    %189 = math.exp %188 : vector<16x16xf32>
    %cst_107 = arith.constant 1.000000e+00 : f32
    %190 = vector.broadcast %cst_107 : f32 to vector<16x16xf32>
    %191 = arith.addf %190, %189 : vector<16x16xf32>
    %192 = arith.divf %190, %191 : vector<16x16xf32>
    %c0_108 = arith.constant 0 : index
    %c0_109 = arith.constant 0 : index
    %193 = vector.load %arg9[%c0_108, %c0_109] : memref<32x16xf32, #tpu.memory_space<vmem>>, vector<16x16xf32>
    tpu.vector_store %arg9[%c0_108, %c0_109], %192 {strides = array<i32>} : memref<32x16xf32, #tpu.memory_space<vmem>>, vector<16x16xf32>,
    %194 = vector.extract_strided_slice %184 {offsets = [16, 0], sizes = [16, 32], strides = [1, 1]} : vector<32x32xbf16> to vector<16x32xbf16>
    %195 = vector.extract_strided_slice %181 {offsets = [16, 0], sizes = [16, 32], strides = [1, 1]} : vector<32x32xbf16> to vector<16x32xbf16>
    %cst_110 = arith.constant dense<0.000000e+00> : vector<16x16xf32>
    %196 = tpu.matmul %194, %195, %cst_110 {dimension_numbers = #tpu.dot_dimension_numbers<[1], [1], [0], [0], [0, 0, 1, 0], [], []>} : vector<16x32xbf16>, vector<16x32xbf16>, vector<16x16xf32> -> vector<16x16xf32>
    %197 = arith.negf %196 : vector<16x16xf32>
    %198 = math.exp %197 : vector<16x16xf32>
    %cst_111 = arith.constant 1.000000e+00 : f32
    %199 = vector.broadcast %cst_111 : f32 to vector<16x16xf32>
    %200 = arith.addf %199, %198 : vector<16x16xf32>
    %201 = arith.divf %199, %200 : vector<16x16xf32>
    %c16 = arith.constant 16 : index
    %c0_112 = arith.constant 0 : index
    %202 = vector.load %arg9[%c16, %c0_112] : memref<32x16xf32, #tpu.memory_space<vmem>>, vector<16x16xf32>
    tpu.vector_store %arg9[%c16, %c0_112], %201 {strides = array<i32>} : memref<32x16xf32, #tpu.memory_space<vmem>>, vector<16x16xf32>,
    return
  }
  func.func @transform_0(%arg0: i32) -> (i32, i32) {
    %c0_i32 = arith.constant 0 : i32
    %c0_i32_0 = arith.constant 0 : i32
    %c0_i32_1 = arith.constant 0 : i32
    return %c0_i32, %c0_i32_0 : i32, i32
  }
  func.func @transform_1(%arg0: i32) -> (i32, i32, i32) {
    %c0_i32 = arith.constant 0 : i32
    %c0_i32_0 = arith.constant 0 : i32
    %c0_i32_1 = arith.constant 0 : i32
    %c0_i32_2 = arith.constant 0 : i32
    return %c0_i32, %c0_i32_0, %c0_i32_1 : i32, i32, i32
  }
  func.func @transform_2(%arg0: i32) -> (i32, i32, i32) {
    %c0_i32 = arith.constant 0 : i32
    %c0_i32_0 = arith.constant 0 : i32
    %c0_i32_1 = arith.constant 0 : i32
    %c0_i32_2 = arith.constant 0 : i32
    return %c0_i32, %c0_i32_0, %c0_i32_1 : i32, i32, i32
  }
  func.func @transform_3(%arg0: i32) -> (i32, i32, i32) {
    %c0_i32 = arith.constant 0 : i32
    %c0_i32_0 = arith.constant 0 : i32
    %c0_i32_1 = arith.constant 0 : i32
    %c0_i32_2 = arith.constant 0 : i32
    return %c0_i32, %c0_i32_0, %c0_i32_1 : i32, i32, i32
  }
  func.func @transform_4(%arg0: i32) -> (i32, i32, i32) {
    %c0_i32 = arith.constant 0 : i32
    %c0_i32_0 = arith.constant 0 : i32
    %c0_i32_1 = arith.constant 0 : i32
    %c0_i32_2 = arith.constant 0 : i32
    return %c0_i32, %c0_i32_0, %c0_i32_1 : i32, i32, i32
  }
  func.func @transform_5(%arg0: i32) -> (i32, i32, i32) {
    %c0_i32 = arith.constant 0 : i32
    %c0_i32_0 = arith.constant 0 : i32
    %c0_i32_1 = arith.constant 0 : i32
    %c0_i32_2 = arith.constant 0 : i32
    return %c0_i32, %c0_i32_0, %c0_i32_1 : i32, i32, i32
  }
  func.func @transform_6(%arg0: i32) -> (i32, i32, i32) {
    %c0_i32 = arith.constant 0 : i32
    %c0_i32_0 = arith.constant 0 : i32
    %c0_i32_1 = arith.constant 0 : i32
    %c0_i32_2 = arith.constant 0 : i32
    return %c0_i32, %c0_i32_0, %c0_i32_1 : i32, i32, i32
  }
  func.func @transform_7(%arg0: i32) -> (i32, i32) {
    %c0_i32 = arith.constant 0 : i32
    %c0_i32_0 = arith.constant 0 : i32
    %c0_i32_1 = arith.constant 0 : i32
    return %c0_i32, %c0_i32_0 : i32, i32
  }
  func.func @transform_8(%arg0: i32) -> (i32, i32) {
    %c0_i32 = arith.constant 0 : i32
    %c0_i32_0 = arith.constant 0 : i32
    %c0_i32_1 = arith.constant 0 : i32
    return %c0_i32, %c0_i32_0 : i32, i32
  }
}

</mosaic_0001>

<llo_original>
// kernel: sgcn_forward.1
$region0: #{sgcn_forward.1}
  #allocation0 [shape = 'u32[]', space=smem, size = 0x4, offset = 0x4, fixed_abs, tag = 'smem constant byte address 0x4 - core index']
  #allocation1 [shape = 'u32[144,128]{1,0:T(1,128)}', space=vmem, size = 0x12000, scoped, tag = 'internal scratch']
  %s0 = inlined_call_operand.vmem [shape: f32[32,32], index: 0, kind: input, shape index: {}]
  %s1 = inlined_call_operand.vmem [shape: bf16[3,32,32], index: 1, kind: input, shape index: {}]
  %s2 = inlined_call_operand.vmem [shape: f32[3,32,32], index: 2, kind: input, shape index: {}]
  %s3 = inlined_call_operand.vmem [shape: bf16[3,32,32], index: 3, kind: input, shape index: {}]
  %s4 = inlined_call_operand.vmem [shape: f32[3,1,32], index: 4, kind: input, shape index: {}]
  %s5 = inlined_call_operand.vmem [shape: f32[3,1,32], index: 5, kind: input, shape index: {}]
  %s6 = inlined_call_operand.vmem [shape: bf16[3,32,128], index: 6, kind: input, shape index: {}]
  %s7 = inlined_call_operand.vmem [shape: bf16[32,32], index: 7, kind: input, shape index: {}]
  %s8 = inlined_call_operand.hbm [shape: f32[32,16], index: 8, kind: output, shape index: {}]
  %s9 = sld [smem:[#allocation0]]
  $region42: #{sgcn_forward.1} parent=0
    _
  %s11 = ssub.s32 1, %s9
  %s12 = scalar_select 0, %s11, %s9
  $region1: #{sgcn_forward.1} parent=0
    #allocation2 [shape = 'u8[16384]{0}', space=vmem, size = 0x4000, scoped, tag = 'output window, operand 0, single buffered']
    #allocation3 [shape = 's32[1]{0}', space=sflag, size = 0x4, scoped, tag = 'scoped memory for sgcn_forward.1']
    %13 = vsyncpa [#allocation3], 0
    // Predicated region
    $region2: #{sgcn_forward.1} parent=1 // pred_check
      _
    $region3: #{sgcn_forward.1} parent=1 // pred_check_branch
      %15 = sbr.rel (0) target = $region5
    $region4: #{sgcn_forward.1} parent=1 // pred_region
      _
    $region5: #{sgcn_forward.1} parent=1 // pred_fallthru
      _
    // Predicated region
    $region6: #{sgcn_forward.1} parent=1 // pred_check
      _
    $region7: #{sgcn_forward.1} parent=1 // pred_check_branch
      %17 = sbr.rel (0) target = $region9
    $region8: #{sgcn_forward.1} parent=1 // pred_region
      _
    $region9: #{sgcn_forward.1} parent=1 // pred_fallthru
      _
    // Predicated region
    $region10: #{sgcn_forward.1} parent=1 // pred_check
      _
    $region11: #{sgcn_forward.1} parent=1 // pred_check_branch
      %19 = sbr.rel (0) target = $region13
    $region12: #{sgcn_forward.1} parent=1 // pred_region
      _
    $region13: #{sgcn_forward.1} parent=1 // pred_fallthru
      _
    // Predicated region
    $region14: #{sgcn_forward.1} parent=1 // pred_check
      _
    $region15: #{sgcn_forward.1} parent=1 // pred_check_branch
      %21 = sbr.rel (0) target = $region17
    $region16: #{sgcn_forward.1} parent=1 // pred_region
      _
    $region17: #{sgcn_forward.1} parent=1 // pred_fallthru
      _
    // Predicated region
    $region18: #{sgcn_forward.1} parent=1 // pred_check
      _
    $region19: #{sgcn_forward.1} parent=1 // pred_check_branch
      %23 = sbr.rel (0) target = $region21
    $region20: #{sgcn_forward.1} parent=1 // pred_region
      _
    $region21: #{sgcn_forward.1} parent=1 // pred_fallthru
      _
    // Predicated region
    $region22: #{sgcn_forward.1} parent=1 // pred_check
      _
    $region23: #{sgcn_forward.1} parent=1 // pred_check_branch
      %25 = sbr.rel (0) target = $region25
    $region24: #{sgcn_forward.1} parent=1 // pred_region
      _
    $region25: #{sgcn_forward.1} parent=1 // pred_fallthru
      _
    // Predicated region
    $region26: #{sgcn_forward.1} parent=1 // pred_check
      _
    $region27: #{sgcn_forward.1} parent=1 // pred_check_branch
      %27 = sbr.rel (0) target = $region29
    $region28: #{sgcn_forward.1} parent=1 // pred_region
      _
    $region29: #{sgcn_forward.1} parent=1 // pred_fallthru
      _
    // Predicated region
    $region30: #{sgcn_forward.1} parent=1 // pred_check
      _
    $region31: #{sgcn_forward.1} parent=1 // pred_check_branch
      %29 = sbr.rel (0) target = $region33
    $region32: #{sgcn_forward.1} parent=1 // pred_region
      _
    $region33: #{sgcn_forward.1} parent=1 // pred_fallthru
      _
    %v31 = vld [vmem:[%s0] sm:$0xff]
    %v32 = vld [vmem:[%s0 + $0x8] sm:$0xff]
    %v33 = vld [vmem:[%s0 + $0x10] sm:$0xff]
    %v34 = vld [vmem:[%s0 + $0x18] sm:$0xff]
    %v35 = vpack.c.bf16 %v32, %v31
    %v36 = vpack.c.bf16 %v34, %v33
    %v37 = vld [vmem:[%s3] sm:$0xf]
    %v38 = vld [vmem:[%s3 + $0x4] sm:$0xf]
    %v39 = vld [vmem:[%s3 + $0x8] sm:$0xf]
    %v40 = vld [vmem:[%s3 + $0xc] sm:$0xf]
    %v41 = vld [vmem:[%s2] sm:$0xff]
    %v42 = vld [vmem:[%s2 + $0x8] sm:$0xff]
    %v43 = vld [vmem:[%s2 + $0x10] sm:$0xff]
    %v44 = vld [vmem:[%s2 + $0x18] sm:$0xff]
    %v49 = vunpack.c.l.b16 %v37
    %v50 = vunpack.c.l.b16 %v38
    %v51 = vunpack.c.l.b16 %v39
    %v52 = vunpack.c.l.b16 %v40
    %v53 = vpack.c.b16 %v50, %v49
    %v54 = vpack.c.b16 %v52, %v51
    %vm57 = vcmask 261120
    %v59 = vsel %vm57, %v35, 0
    %v62 = vsel %vm57, %v36, 0
    %64 = vmatprep.subr.bf16.mxu0 0
    %65 = vmatpush1.bf16.msra.mxu0 0
    %66 = vmatprep.subr.bf16.mxu0 0
    %67 = vmatpush1.bf16.msra.mxu0 0
    %68 = vmatprep.subr.bf16.mxu0 0
    %69 = vmatpush1.bf16.msra.mxu0 0
    %70 = vmatprep.subr.bf16.mxu0 0
    %71 = vmatpush1.bf16.msra.mxu0 0
    %72 = vmatprep.subr.bf16.mxu0 0
    %73 = vmatpush1.bf16.msra.mxu0 0
    %74 = vmatprep.subr.bf16.mxu0 0
    %75 = vmatpush1.bf16.msra.mxu0 0
    %76 = vmatprep.subr.bf16.mxu0 0
    %77 = vmatpush1.bf16.msra.mxu0 %v54
    %78 = vmatprep.subr.bf16.mxu0 0
    %79 = vmatpush1.bf16.msra.mxu0 %v53
    %80 = vmatprep.subr.bf16.mxu0 0
    %81 = vmatpush2.bf16.msra.mxu0 0
    %82 = vmatprep.subr.bf16.mxu0 0
    %83 = vmatpush2.bf16.msra.mxu0 0
    %84 = vmatprep.subr.bf16.mxu0 0
    %85 = vmatpush2.bf16.msra.mxu0 0
    %86 = vmatprep.subr.bf16.mxu0 0
    %87 = vmatpush2.bf16.msra.mxu0 0
    %88 = vmatprep.subr.bf16.mxu0 0
    %89 = vmatpush2.bf16.msra.mxu0 0
    %90 = vmatprep.subr.bf16.mxu0 0
    %91 = vmatpush2.bf16.msra.mxu0 0
    %92 = vmatprep.subr.bf16.mxu0 0
    %93 = vmatpush2.bf16.msra.mxu0 0
    %94 = vmatprep.subr.bf16.mxu0 0
    %95 = vmatpush2.bf16.msra.mxu0 0
    %96 = vmatprep.mubr.bf16.mxu0 0
    %97 = vmatmul.mubr.bf16.gmra.mxu0 %v59
    %v98 = vpop.f32.mrf.mxu0
    %v99 = vadd.f32 %v41, %v98
    %v100 = vpop.f32.mrf.mxu0
    %v101 = vpop.f32.mrf.mxu0
    %v102 = vadd.f32 %v42, %v101
    %v103 = vpop.f32.mrf.mxu0
    %104 = vmatprep.mubr.bf16.mxu0 0
    %105 = vmatmul.mubr.bf16.gmra.mxu0 %v62
    %v106 = vpop.f32.mrf.mxu0
    %v107 = vadd.f32 %v43, %v106
    %v108 = vpop.f32.mrf.mxu0
    %v109 = vpop.f32.mrf.mxu0
    %v110 = vadd.f32 %v44, %v109
    %v111 = vpop.f32.mrf.mxu0
    %112 = vdwg.mxu0
    %v113 = vsel %vm57, %v99, 0.0
    %114 = vadd.xlane.f32.xlu0 %v113
    %v115 = vpop.xlane.xlu0 %114
    %v116 = vsel %vm57, %v102, 0.0
    %117 = vadd.xlane.f32.xlu0 %v116
    %v118 = vpop.xlane.xlu0 %117
    %v119 = vsel %vm57, %v107, 0.0
    %120 = vadd.xlane.f32.xlu0 %v119
    %v121 = vpop.xlane.xlu0 %120
    %v122 = vsel %vm57, %v110, 0.0
    %123 = vadd.xlane.f32.xlu0 %v122
    %v124 = vpop.xlane.xlu0 %123
    %v125 = vrcp.pop 32.0
    %v126 = vmul.f32 %v115, %v125
    %v127 = vmul.f32 %v118, %v125
    %v128 = vmul.f32 %v121, %v125
    %v129 = vmul.f32 %v124, %v125
    %v130 = vsub.f32 %v99, %v126
    %v131 = vsub.f32 %v102, %v127
    %v132 = vsub.f32 %v107, %v128
    %v133 = vsub.f32 %v110, %v129
    %v134 = vmul.f32 %v130, %v130
    %v135 = vmul.f32 %v131, %v131
    %v136 = vmul.f32 %v132, %v132
    %v137 = vmul.f32 %v133, %v133
    %v138 = vsel %vm57, %v134, 0.0
    %139 = vadd.xlane.f32.xlu0 %v138
    %v140 = vpop.xlane.xlu0 %139
    %v141 = vsel %vm57, %v135, 0.0
    %142 = vadd.xlane.f32.xlu0 %v141
    %v143 = vpop.xlane.xlu0 %142
    %v144 = vsel %vm57, %v136, 0.0
    %145 = vadd.xlane.f32.xlu0 %v144
    %v146 = vpop.xlane.xlu0 %145
    %v147 = vsel %vm57, %v137, 0.0
    %148 = vadd.xlane.f32.xlu0 %v147
    %v149 = vpop.xlane.xlu0 %148
    %v150 = vmul.f32 %v140, %v125
    %v151 = vmul.f32 %v143, %v125
    %v152 = vmul.f32 %v146, %v125
    %v153 = vmul.f32 %v149, %v125
    %v154 = vadd.f32 %v150, 1e-05
    %v155 = vadd.f32 %v151, 1e-05
    %v156 = vadd.f32 %v152, 1e-05
    %v157 = vadd.f32 %v153, 1e-05
    %v158 = vrsqrt.pop %v154
    %v159 = vrsqrt.pop %v155
    %v160 = vrsqrt.pop %v156
    %v161 = vrsqrt.pop %v157
    %v162 = vmul.f32 %v130, %v158
    %v163 = vmul.f32 %v131, %v159
    %v164 = vmul.f32 %v132, %v160
    %v165 = vmul.f32 %v133, %v161
    %v166 = vld [vmem:[%s4] sm:$0x1]
    %v168 = vlaneseq
    %v169 = vshrl.u32 %v168, 7
    %v170 = vsub.s32 0, %v169
    %v171 = vrot.slane %v166, %v170
    %v173 = vmul.f32 %v162, %v171
    %v174 = vmul.f32 %v163, %v171
    %v175 = vmul.f32 %v164, %v171
    %v176 = vmul.f32 %v165, %v171
    %v177 = vld [vmem:[%s5] sm:$0x1]
    %v179 = vlaneseq
    %v180 = vshrl.u32 %v179, 7
    %v181 = vsub.s32 0, %v180
    %v182 = vrot.slane %v177, %v181
    %v184 = vadd.f32 %v173, %v182
    %v185 = vadd.f32 %v174, %v182
    %v186 = vadd.f32 %v175, %v182
    %v187 = vadd.f32 %v176, %v182
    %v188 = vtanh.pop %v184
    %v189 = vtanh.pop %v185
    %v190 = vtanh.pop %v186
    %v191 = vtanh.pop %v187
    %v192 = vpack.c.bf16 %v189, %v188
    %v193 = vpack.c.bf16 %v191, %v190
    %v194 = vld [vmem:[%s6] sm:$0xf]
    %v195 = vld [vmem:[%s6 + $0x4] sm:$0xf]
    %v196 = vld [vmem:[%s6 + $0x8] sm:$0xf]
    %v197 = vld [vmem:[%s6 + $0xc] sm:$0xf]
    %v202 = vunpack.c.l.b16 %v194
    %v203 = vunpack.c.l.b16 %v195
    %v204 = vunpack.c.l.b16 %v196
    %v205 = vunpack.c.l.b16 %v197
    %v206 = vpack.c.b16 %v203, %v202
    %v207 = vpack.c.b16 %v205, %v204
    %v211 = vsel %vm57, %v192, 0
    %v214 = vsel %vm57, %v193, 0
    %216 = vmatprep.subr.bf16.mxu0 0
    %217 = vmatpush1.bf16.msra.mxu0 0
    %218 = vmatprep.subr.bf16.mxu0 0
    %219 = vmatpush1.bf16.msra.mxu0 0
    %220 = vmatprep.subr.bf16.mxu0 0
    %221 = vmatpush1.bf16.msra.mxu0 0
    %222 = vmatprep.subr.bf16.mxu0 0
    %223 = vmatpush1.bf16.msra.mxu0 0
    %224 = vmatprep.subr.bf16.mxu0 0
    %225 = vmatpush1.bf16.msra.mxu0 0
    %226 = vmatprep.subr.bf16.mxu0 0
    %227 = vmatpush1.bf16.msra.mxu0 0
    %228 = vmatprep.subr.bf16.mxu0 0
    %229 = vmatpush1.bf16.msra.mxu0 %v207
    %230 = vmatprep.subr.bf16.mxu0 0
    %231 = vmatpush1.bf16.msra.mxu0 %v206
    %232 = vmatprep.subr.bf16.mxu0 0
    %233 = vmatpush2.bf16.msra.mxu0 0
    %234 = vmatprep.subr.bf16.mxu0 0
    %235 = vmatpush2.bf16.msra.mxu0 0
    %236 = vmatprep.subr.bf16.mxu0 0
    %237 = vmatpush2.bf16.msra.mxu0 0
    %238 = vmatprep.subr.bf16.mxu0 0
    %239 = vmatpush2.bf16.msra.mxu0 0
    %240 = vmatprep.subr.bf16.mxu0 0
    %241 = vmatpush2.bf16.msra.mxu0 0
    %242 = vmatprep.subr.bf16.mxu0 0
    %243 = vmatpush2.bf16.msra.mxu0 0
    %244 = vmatprep.subr.bf16.mxu0 0
    %245 = vmatpush2.bf16.msra.mxu0 0
    %246 = vmatprep.subr.bf16.mxu0 0
    %247 = vmatpush2.bf16.msra.mxu0 0
    %248 = vmatprep.mubr.bf16.mxu0 0
    %249 = vmatmul.mubr.bf16.gmra.mxu0 %v211
    %v250 = vpop.f32.mrf.mxu0
    %v251 = vadd.f32 0.0, %v250
    %v252 = vpop.f32.mrf.mxu0
    %v253 = vpop.f32.mrf.mxu0
    %v254 = vadd.f32 0.0, %v253
    %v255 = vpop.f32.mrf.mxu0
    %256 = vmatprep.mubr.bf16.mxu0 0
    %257 = vmatmul.mubr.bf16.gmra.mxu0 %v214
    %v258 = vpop.f32.mrf.mxu0
    %v259 = vadd.f32 0.0, %v258
    %v260 = vpop.f32.mrf.mxu0
    %v261 = vpop.f32.mrf.mxu0
    %v262 = vadd.f32 0.0, %v261
    %v263 = vpop.f32.mrf.mxu0
    %264 = vdwg.mxu0
    %v265 = vld [vmem:[%s1] sm:$0xf]
    %v266 = vld [vmem:[%s1 + $0x4] sm:$0xf]
    %v267 = vld [vmem:[%s1 + $0x8] sm:$0xf]
    %v268 = vld [vmem:[%s1 + $0xc] sm:$0xf]
    %v269 = vpack.c.bf16 %v254, %v251
    %v270 = vpack.c.bf16 %v262, %v259
    %v275 = vunpack.c.l.b16 %v265
    %v276 = vunpack.c.l.b16 %v266
    %v277 = vunpack.c.l.b16 %v267
    %v278 = vunpack.c.l.b16 %v268
    %v279 = vpack.c.b16 %v276, %v275
    %v280 = vpack.c.b16 %v278, %v277
    %283 = vrot.lane.b32.xlu0 %v269, 96
    %v284 = vpop.permute.xlu0 %283
    %285 = vrot.lane.b32.xlu0 %v270, 96
    %v286 = vpop.permute.xlu0 %285
    %v290 = vsel %vm57, %v279, 0
    %v293 = vsel %vm57, %v280, 0
    %295 = vmatprep.subr.bf16.mxu0 0
    %296 = vmatpush1.bf16.msra.mxu0 0
    %297 = vmatprep.subr.bf16.mxu0 0
    %298 = vmatpush1.bf16.msra.mxu0 0
    %299 = vmatprep.subr.bf16.mxu0 0
    %300 = vmatpush1.bf16.msra.mxu0 0
    %301 = vmatprep.subr.bf16.mxu0 0
    %302 = vmatpush1.bf16.msra.mxu0 0
    %303 = vmatprep.subr.bf16.mxu0 0
    %304 = vmatpush1.bf16.msra.mxu0 0
    %305 = vmatprep.subr.bf16.mxu0 0
    %306 = vmatpush1.bf16.msra.mxu0 0
    %307 = vmatprep.subr.bf16.mxu0 0
    %308 = vmatpush1.bf16.msra.mxu0 %v286
    %309 = vmatprep.subr.bf16.mxu0 0
    %310 = vmatpush1.bf16.msra.mxu0 %v284
    %311 = vmatprep.subr.bf16.mxu0 0
    %312 = vmatpush2.bf16.msra.mxu0 0
    %313 = vmatprep.subr.bf16.mxu0 0
    %314 = vmatpush2.bf16.msra.mxu0 0
    %315 = vmatprep.subr.bf16.mxu0 0
    %316 = vmatpush2.bf16.msra.mxu0 0
    %317 = vmatprep.subr.bf16.mxu0 0
    %318 = vmatpush2.bf16.msra.mxu0 0
    %319 = vmatprep.subr.bf16.mxu0 0
    %320 = vmatpush2.bf16.msra.mxu0 0
    %321 = vmatprep.subr.bf16.mxu0 0
    %322 = vmatpush2.bf16.msra.mxu0 0
    %323 = vmatprep.subr.bf16.mxu0 0
    %324 = vmatpush2.bf16.msra.mxu0 0
    %325 = vmatprep.subr.bf16.mxu0 0
    %326 = vmatpush2.bf16.msra.mxu0 0
    %327 = vmatprep.mubr.bf16.mxu0 0
    %328 = vmatmul.mubr.bf16.gmra.mxu0 %v290
    %v329 = vpop.f32.mrf.mxu0
    %v330 = vadd.f32 0.0, %v329
    %v331 = vpop.f32.mrf.mxu0
    %v332 = vpop.f32.mrf.mxu0
    %v333 = vadd.f32 0.0, %v332
    %v334 = vpop.f32.mrf.mxu0
    %335 = vmatprep.mubr.bf16.mxu0 0
    %336 = vmatmul.mubr.bf16.gmra.mxu0 %v293
    %v337 = vpop.f32.mrf.mxu0
    %v338 = vadd.f32 0.0, %v337
    %v339 = vpop.f32.mrf.mxu0
    %v340 = vpop.f32.mrf.mxu0
    %v341 = vadd.f32 0.0, %v340
    %v342 = vpop.f32.mrf.mxu0
    %343 = vdwg.mxu0
    %v344 = vadd.f32 %v251, %v330
    %v345 = vadd.f32 %v254, %v333
    %v346 = vadd.f32 %v259, %v338
    %v347 = vadd.f32 %v262, %v341
    %s348 = scalar_lea.vmem %s1, 16
    %v349 = vld [vmem:[%s348] sm:$0xf]
    %v350 = vld [vmem:[%s348 + $0x4] sm:$0xf]
    %v351 = vld [vmem:[%s348 + $0x8] sm:$0xf]
    %v352 = vld [vmem:[%s348 + $0xc] sm:$0xf]
    %v357 = vunpack.c.l.b16 %v349
    %v358 = vunpack.c.l.b16 %v350
    %v359 = vunpack.c.l.b16 %v351
    %v360 = vunpack.c.l.b16 %v352
    %v361 = vpack.c.b16 %v358, %v357
    %v362 = vpack.c.b16 %v360, %v359
    %363 = vrot.lane.b32.xlu0 %v269, 64
    %v364 = vpop.permute.xlu0 %363
    %365 = vrot.lane.b32.xlu0 %v270, 64
    %v366 = vpop.permute.xlu0 %365
    %v370 = vsel %vm57, %v361, 0
    %v373 = vsel %vm57, %v362, 0
    %375 = vmatprep.subr.bf16.mxu0 0
    %376 = vmatpush1.bf16.msra.mxu0 0
    %377 = vmatprep.subr.bf16.mxu0 0
    %378 = vmatpush1.bf16.msra.mxu0 0
    %379 = vmatprep.subr.bf16.mxu0 0
    %380 = vmatpush1.bf16.msra.mxu0 0
    %381 = vmatprep.subr.bf16.mxu0 0
    %382 = vmatpush1.bf16.msra.mxu0 0
    %383 = vmatprep.subr.bf16.mxu0 0
    %384 = vmatpush1.bf16.msra.mxu0 0
    %385 = vmatprep.subr.bf16.mxu0 0
    %386 = vmatpush1.bf16.msra.mxu0 0
    %387 = vmatprep.subr.bf16.mxu0 0
    %388 = vmatpush1.bf16.msra.mxu0 %v366
    %389 = vmatprep.subr.bf16.mxu0 0
    %390 = vmatpush1.bf16.msra.mxu0 %v364
    %391 = vmatprep.subr.bf16.mxu0 0
    %392 = vmatpush2.bf16.msra.mxu0 0
    %393 = vmatprep.subr.bf16.mxu0 0
    %394 = vmatpush2.bf16.msra.mxu0 0
    %395 = vmatprep.subr.bf16.mxu0 0
    %396 = vmatpush2.bf16.msra.mxu0 0
    %397 = vmatprep.subr.bf16.mxu0 0
    %398 = vmatpush2.bf16.msra.mxu0 0
    %399 = vmatprep.subr.bf16.mxu0 0
    %400 = vmatpush2.bf16.msra.mxu0 0
    %401 = vmatprep.subr.bf16.mxu0 0
    %402 = vmatpush2.bf16.msra.mxu0 0
    %403 = vmatprep.subr.bf16.mxu0 0
    %404 = vmatpush2.bf16.msra.mxu0 0
    %405 = vmatprep.subr.bf16.mxu0 0
    %406 = vmatpush2.bf16.msra.mxu0 0
    %407 = vmatprep.mubr.bf16.mxu0 0
    %408 = vmatmul.mubr.bf16.gmra.mxu0 %v370
    %v409 = vpop.f32.mrf.mxu0
    %v410 = vadd.f32 0.0, %v409
    %v411 = vpop.f32.mrf.mxu0
    %v412 = vpop.f32.mrf.mxu0
    %v413 = vadd.f32 0.0, %v412
    %v414 = vpop.f32.mrf.mxu0
    %415 = vmatprep.mubr.bf16.mxu0 0
    %416 = vmatmul.mubr.bf16.gmra.mxu0 %v373
    %v417 = vpop.f32.mrf.mxu0
    %v418 = vadd.f32 0.0, %v417
    %v419 = vpop.f32.mrf.mxu0
    %v420 = vpop.f32.mrf.mxu0
    %v421 = vadd.f32 0.0, %v420
    %v422 = vpop.f32.mrf.mxu0
    %423 = vdwg.mxu0
    %v424 = vadd.f32 %v344, %v410
    %v425 = vadd.f32 %v345, %v413
    %v426 = vadd.f32 %v346, %v418
    %v427 = vadd.f32 %v347, %v421
    %s428 = scalar_lea.vmem %s1, 32
    %v429 = vld [vmem:[%s428] sm:$0xf]
    %v430 = vld [vmem:[%s428 + $0x4] sm:$0xf]
    %v431 = vld [vmem:[%s428 + $0x8] sm:$0xf]
    %v432 = vld [vmem:[%s428 + $0xc] sm:$0xf]
    %v437 = vunpack.c.l.b16 %v429
    %v438 = vunpack.c.l.b16 %v430
    %v439 = vunpack.c.l.b16 %v431
    %v440 = vunpack.c.l.b16 %v432
    %v441 = vpack.c.b16 %v438, %v437
    %v442 = vpack.c.b16 %v440, %v439
    %443 = vrot.lane.b32.xlu0 %v269, 32
    %v444 = vpop.permute.xlu0 %443
    %445 = vrot.lane.b32.xlu0 %v270, 32
    %v446 = vpop.permute.xlu0 %445
    %v450 = vsel %vm57, %v441, 0
    %v453 = vsel %vm57, %v442, 0
    %455 = vmatprep.subr.bf16.mxu0 0
    %456 = vmatpush1.bf16.msra.mxu0 0
    %457 = vmatprep.subr.bf16.mxu0 0
    %458 = vmatpush1.bf16.msra.mxu0 0
    %459 = vmatprep.subr.bf16.mxu0 0
    %460 = vmatpush1.bf16.msra.mxu0 0
    %461 = vmatprep.subr.bf16.mxu0 0
    %462 = vmatpush1.bf16.msra.mxu0 0
    %463 = vmatprep.subr.bf16.mxu0 0
    %464 = vmatpush1.bf16.msra.mxu0 0
    %465 = vmatprep.subr.bf16.mxu0 0
    %466 = vmatpush1.bf16.msra.mxu0 0
    %467 = vmatprep.subr.bf16.mxu0 0
    %468 = vmatpush1.bf16.msra.mxu0 %v446
    %469 = vmatprep.subr.bf16.mxu0 0
    %470 = vmatpush1.bf16.msra.mxu0 %v444
    %471 = vmatprep.subr.bf16.mxu0 0
    %472 = vmatpush2.bf16.msra.mxu0 0
    %473 = vmatprep.subr.bf16.mxu0 0
    %474 = vmatpush2.bf16.msra.mxu0 0
    %475 = vmatprep.subr.bf16.mxu0 0
    %476 = vmatpush2.bf16.msra.mxu0 0
    %477 = vmatprep.subr.bf16.mxu0 0
    %478 = vmatpush2.bf16.msra.mxu0 0
    %479 = vmatprep.subr.bf16.mxu0 0
    %480 = vmatpush2.bf16.msra.mxu0 0
    %481 = vmatprep.subr.bf16.mxu0 0
    %482 = vmatpush2.bf16.msra.mxu0 0
    %483 = vmatprep.subr.bf16.mxu0 0
    %484 = vmatpush2.bf16.msra.mxu0 0
    %485 = vmatprep.subr.bf16.mxu0 0
    %486 = vmatpush2.bf16.msra.mxu0 0
    %487 = vmatprep.mubr.bf16.mxu0 0
    %488 = vmatmul.mubr.bf16.gmra.mxu0 %v450
    %v489 = vpop.f32.mrf.mxu0
    %v490 = vadd.f32 0.0, %v489
    %v491 = vpop.f32.mrf.mxu0
    %v492 = vpop.f32.mrf.mxu0
    %v493 = vadd.f32 0.0, %v492
    %v494 = vpop.f32.mrf.mxu0
    %495 = vmatprep.mubr.bf16.mxu0 0
    %496 = vmatmul.mubr.bf16.gmra.mxu0 %v453
    %v497 = vpop.f32.mrf.mxu0
    %v498 = vadd.f32 0.0, %v497
    %v499 = vpop.f32.mrf.mxu0
    %v500 = vpop.f32.mrf.mxu0
    %v501 = vadd.f32 0.0, %v500
    %v502 = vpop.f32.mrf.mxu0
    %503 = vdwg.mxu0
    %v504 = vadd.f32 %v424, %v490
    %v505 = vadd.f32 %v425, %v493
    %v506 = vadd.f32 %v426, %v498
    %v507 = vadd.f32 %v427, %v501
    %v508 = vmul.f32 %v504, 0.25
    %v509 = vmul.f32 %v505, 0.25
    %v510 = vmul.f32 %v506, 0.25
    %v511 = vmul.f32 %v507, 0.25
    %v512 = vadd.f32 %v508, %v31
    %v513 = vadd.f32 %v509, %v32
    %v514 = vadd.f32 %v510, %v33
    %v515 = vadd.f32 %v511, %v34
    %v516 = vpack.c.bf16 %v513, %v512
    %v517 = vpack.c.bf16 %v515, %v514
    %s518 = scalar_lea.vmem %s3, 16
    %v519 = vld [vmem:[%s518] sm:$0xf]
    %v520 = vld [vmem:[%s518 + $0x4] sm:$0xf]
    %v521 = vld [vmem:[%s518 + $0x8] sm:$0xf]
    %v522 = vld [vmem:[%s518 + $0xc] sm:$0xf]
    %s523 = scalar_lea.vmem %s2, 32
    %v524 = vld [vmem:[%s523] sm:$0xff]
    %v525 = vld [vmem:[%s523 + $0x8] sm:$0xff]
    %v526 = vld [vmem:[%s523 + $0x10] sm:$0xff]
    %v527 = vld [vmem:[%s523 + $0x18] sm:$0xff]
    %v532 = vunpack.c.l.b16 %v519
    %v533 = vunpack.c.l.b16 %v520
    %v534 = vunpack.c.l.b16 %v521
    %v535 = vunpack.c.l.b16 %v522
    %v536 = vpack.c.b16 %v533, %v532
    %v537 = vpack.c.b16 %v535, %v534
    %v541 = vsel %vm57, %v516, 0
    %v544 = vsel %vm57, %v517, 0
    %546 = vmatprep.subr.bf16.mxu0 0
    %547 = vmatpush1.bf16.msra.mxu0 0
    %548 = vmatprep.subr.bf16.mxu0 0
    %549 = vmatpush1.bf16.msra.mxu0 0
    %550 = vmatprep.subr.bf16.mxu0 0
    %551 = vmatpush1.bf16.msra.mxu0 0
    %552 = vmatprep.subr.bf16.mxu0 0
    %553 = vmatpush1.bf16.msra.mxu0 0
    %554 = vmatprep.subr.bf16.mxu0 0
    %555 = vmatpush1.bf16.msra.mxu0 0
    %556 = vmatprep.subr.bf16.mxu0 0
    %557 = vmatpush1.bf16.msra.mxu0 0
    %558 = vmatprep.subr.bf16.mxu0 0
    %559 = vmatpush1.bf16.msra.mxu0 %v537
    %560 = vmatprep.subr.bf16.mxu0 0
    %561 = vmatpush1.bf16.msra.mxu0 %v536
    %562 = vmatprep.subr.bf16.mxu0 0
    %563 = vmatpush2.bf16.msra.mxu0 0
    %564 = vmatprep.subr.bf16.mxu0 0
    %565 = vmatpush2.bf16.msra.mxu0 0
    %566 = vmatprep.subr.bf16.mxu0 0
    %567 = vmatpush2.bf16.msra.mxu0 0
    %568 = vmatprep.subr.bf16.mxu0 0
    %569 = vmatpush2.bf16.msra.mxu0 0
    %570 = vmatprep.subr.bf16.mxu0 0
    %571 = vmatpush2.bf16.msra.mxu0 0
    %572 = vmatprep.subr.bf16.mxu0 0
    %573 = vmatpush2.bf16.msra.mxu0 0
    %574 = vmatprep.subr.bf16.mxu0 0
    %575 = vmatpush2.bf16.msra.mxu0 0
    %576 = vmatprep.subr.bf16.mxu0 0
    %577 = vmatpush2.bf16.msra.mxu0 0
    %578 = vmatprep.mubr.bf16.mxu0 0
    %579 = vmatmul.mubr.bf16.gmra.mxu0 %v541
    %v580 = vpop.f32.mrf.mxu0
    %v581 = vadd.f32 %v524, %v580
    %v582 = vpop.f32.mrf.mxu0
    %v583 = vpop.f32.mrf.mxu0
    %v584 = vadd.f32 %v525, %v583
    %v585 = vpop.f32.mrf.mxu0
    %586 = vmatprep.mubr.bf16.mxu0 0
    %587 = vmatmul.mubr.bf16.gmra.mxu0 %v544
    %v588 = vpop.f32.mrf.mxu0
    %v589 = vadd.f32 %v526, %v588
    %v590 = vpop.f32.mrf.mxu0
    %v591 = vpop.f32.mrf.mxu0
    %v592 = vadd.f32 %v527, %v591
    %v593 = vpop.f32.mrf.mxu0
    %594 = vdwg.mxu0
    %v595 = vsel %vm57, %v581, 0.0
    %596 = vadd.xlane.f32.xlu0 %v595
    %v597 = vpop.xlane.xlu0 %596
    %v598 = vsel %vm57, %v584, 0.0
    %599 = vadd.xlane.f32.xlu0 %v598
    %v600 = vpop.xlane.xlu0 %599
    %v601 = vsel %vm57, %v589, 0.0
    %602 = vadd.xlane.f32.xlu0 %v601
    %v603 = vpop.xlane.xlu0 %602
    %v604 = vsel %vm57, %v592, 0.0
    %605 = vadd.xlane.f32.xlu0 %v604
    %v606 = vpop.xlane.xlu0 %605
    %v607 = vmul.f32 %v597, %v125
    %v608 = vmul.f32 %v600, %v125
    %v609 = vmul.f32 %v603, %v125
    %v610 = vmul.f32 %v606, %v125
    %v611 = vsub.f32 %v581, %v607
    %v612 = vsub.f32 %v584, %v608
    %v613 = vsub.f32 %v589, %v609
    %v614 = vsub.f32 %v592, %v610
    %v615 = vmul.f32 %v611, %v611
    %v616 = vmul.f32 %v612, %v612
    %v617 = vmul.f32 %v613, %v613
    %v618 = vmul.f32 %v614, %v614
    %v619 = vsel %vm57, %v615, 0.0
    %620 = vadd.xlane.f32.xlu0 %v619
    %v621 = vpop.xlane.xlu0 %620
    %v622 = vsel %vm57, %v616, 0.0
    %623 = vadd.xlane.f32.xlu0 %v622
    %v624 = vpop.xlane.xlu0 %623
    %v625 = vsel %vm57, %v617, 0.0
    %626 = vadd.xlane.f32.xlu0 %v625
    %v627 = vpop.xlane.xlu0 %626
    %v628 = vsel %vm57, %v618, 0.0
    %629 = vadd.xlane.f32.xlu0 %v628
    %v630 = vpop.xlane.xlu0 %629
    %v631 = vmul.f32 %v621, %v125
    %v632 = vmul.f32 %v624, %v125
    %v633 = vmul.f32 %v627, %v125
    %v634 = vmul.f32 %v630, %v125
    %v635 = vadd.f32 %v631, 1e-05
    %v636 = vadd.f32 %v632, 1e-05
    %v637 = vadd.f32 %v633, 1e-05
    %v638 = vadd.f32 %v634, 1e-05
    %v639 = vrsqrt.pop %v635
    %v640 = vrsqrt.pop %v636
    %v641 = vrsqrt.pop %v637
    %v642 = vrsqrt.pop %v638
    %v643 = vmul.f32 %v611, %v639
    %v644 = vmul.f32 %v612, %v640
    %v645 = vmul.f32 %v613, %v641
    %v646 = vmul.f32 %v614, %v642
    %s647 = scalar_lea.vmem %s4, 1
    %v648 = vld [vmem:[%s647] sm:$0x1]
    %v650 = vlaneseq
    %v651 = vshrl.u32 %v650, 7
    %v652 = vsub.s32 0, %v651
    %v653 = vrot.slane %v648, %v652
    %v655 = vmul.f32 %v643, %v653
    %v656 = vmul.f32 %v644, %v653
    %v657 = vmul.f32 %v645, %v653
    %v658 = vmul.f32 %v646, %v653
    %s659 = scalar_lea.vmem %s5, 1
    %v660 = vld [vmem:[%s659] sm:$0x1]
    %v662 = vlaneseq
    %v663 = vshrl.u32 %v662, 7
    %v664 = vsub.s32 0, %v663
    %v665 = vrot.slane %v660, %v664
    %v667 = vadd.f32 %v655, %v665
    %v668 = vadd.f32 %v656, %v665
    %v669 = vadd.f32 %v657, %v665
    %v670 = vadd.f32 %v658, %v665
    %v671 = vtanh.pop %v667
    %v672 = vtanh.pop %v668
    %v673 = vtanh.pop %v669
    %v674 = vtanh.pop %v670
    %v675 = vpack.c.bf16 %v672, %v671
    %v676 = vpack.c.bf16 %v674, %v673
    %s677 = scalar_lea.vmem %s6, 16
    %v678 = vld [vmem:[%s677] sm:$0xf]
    %v679 = vld [vmem:[%s677 + $0x4] sm:$0xf]
    %v680 = vld [vmem:[%s677 + $0x8] sm:$0xf]
    %v681 = vld [vmem:[%s677 + $0xc] sm:$0xf]
    %v686 = vunpack.c.l.b16 %v678
    %v687 = vunpack.c.l.b16 %v679
    %v688 = vunpack.c.l.b16 %v680
    %v689 = vunpack.c.l.b16 %v681
    %v690 = vpack.c.b16 %v687, %v686
    %v691 = vpack.c.b16 %v689, %v688
    %v695 = vsel %vm57, %v675, 0
    %v698 = vsel %vm57, %v676, 0
    %700 = vmatprep.subr.bf16.mxu0 0
    %701 = vmatpush1.bf16.msra.mxu0 0
    %702 = vmatprep.subr.bf16.mxu0 0
    %703 = vmatpush1.bf16.msra.mxu0 0
    %704 = vmatprep.subr.bf16.mxu0 0
    %705 = vmatpush1.bf16.msra.mxu0 0
    %706 = vmatprep.subr.bf16.mxu0 0
    %707 = vmatpush1.bf16.msra.mxu0 0
    %708 = vmatprep.subr.bf16.mxu0 0
    %709 = vmatpush1.bf16.msra.mxu0 0
    %710 = vmatprep.subr.bf16.mxu0 0
    %711 = vmatpush1.bf16.msra.mxu0 0
    %712 = vmatprep.subr.bf16.mxu0 0
    %713 = vmatpush1.bf16.msra.mxu0 %v691
    %714 = vmatprep.subr.bf16.mxu0 0
    %715 = vmatpush1.bf16.msra.mxu0 %v690
    %716 = vmatprep.subr.bf16.mxu0 0
    %717 = vmatpush2.bf16.msra.mxu0 0
    %718 = vmatprep.subr.bf16.mxu0 0
    %719 = vmatpush2.bf16.msra.mxu0 0
    %720 = vmatprep.subr.bf16.mxu0 0
    %721 = vmatpush2.bf16.msra.mxu0 0
    %722 = vmatprep.subr.bf16.mxu0 0
    %723 = vmatpush2.bf16.msra.mxu0 0
    %724 = vmatprep.subr.bf16.mxu0 0
    %725 = vmatpush2.bf16.msra.mxu0 0
    %726 = vmatprep.subr.bf16.mxu0 0
    %727 = vmatpush2.bf16.msra.mxu0 0
    %728 = vmatprep.subr.bf16.mxu0 0
    %729 = vmatpush2.bf16.msra.mxu0 0
    %730 = vmatprep.subr.bf16.mxu0 0
    %731 = vmatpush2.bf16.msra.mxu0 0
    %732 = vmatprep.mubr.bf16.mxu0 0
    %733 = vmatmul.mubr.bf16.gmra.mxu0 %v695
    %v734 = vpop.f32.mrf.mxu0
    %v735 = vadd.f32 0.0, %v734
    %v736 = vpop.f32.mrf.mxu0
    %v737 = vpop.f32.mrf.mxu0
    %v738 = vadd.f32 0.0, %v737
    %v739 = vpop.f32.mrf.mxu0
    %740 = vmatprep.mubr.bf16.mxu0 0
    %741 = vmatmul.mubr.bf16.gmra.mxu0 %v698
    %v742 = vpop.f32.mrf.mxu0
    %v743 = vadd.f32 0.0, %v742
    %v744 = vpop.f32.mrf.mxu0
    %v745 = vpop.f32.mrf.mxu0
    %v746 = vadd.f32 0.0, %v745
    %v747 = vpop.f32.mrf.mxu0
    %748 = vdwg.mxu0
    %v749 = vpack.c.bf16 %v738, %v735
    %v750 = vpack.c.bf16 %v746, %v743
    %753 = vrot.lane.b32.xlu0 %v749, 96
    %v754 = vpop.permute.xlu0 %753
    %755 = vrot.lane.b32.xlu0 %v750, 96
    %v756 = vpop.permute.xlu0 %755
    %759 = vmatprep.subr.bf16.mxu0 0
    %760 = vmatpush1.bf16.msra.mxu0 0
    %761 = vmatprep.subr.bf16.mxu0 0
    %762 = vmatpush1.bf16.msra.mxu0 0
    %763 = vmatprep.subr.bf16.mxu0 0
    %764 = vmatpush1.bf16.msra.mxu0 0
    %765 = vmatprep.subr.bf16.mxu0 0
    %766 = vmatpush1.bf16.msra.mxu0 0
    %767 = vmatprep.subr.bf16.mxu0 0
    %768 = vmatpush1.bf16.msra.mxu0 0
    %769 = vmatprep.subr.bf16.mxu0 0
    %770 = vmatpush1.bf16.msra.mxu0 0
    %771 = vmatprep.subr.bf16.mxu0 0
    %772 = vmatpush1.bf16.msra.mxu0 %v756
    %773 = vmatprep.subr.bf16.mxu0 0
    %774 = vmatpush1.bf16.msra.mxu0 %v754
    %775 = vmatprep.subr.bf16.mxu0 0
    %776 = vmatpush2.bf16.msra.mxu0 0
    %777 = vmatprep.subr.bf16.mxu0 0
    %778 = vmatpush2.bf16.msra.mxu0 0
    %779 = vmatprep.subr.bf16.mxu0 0
    %780 = vmatpush2.bf16.msra.mxu0 0
    %781 = vmatprep.subr.bf16.mxu0 0
    %782 = vmatpush2.bf16.msra.mxu0 0
    %783 = vmatprep.subr.bf16.mxu0 0
    %784 = vmatpush2.bf16.msra.mxu0 0
    %785 = vmatprep.subr.bf16.mxu0 0
    %786 = vmatpush2.bf16.msra.mxu0 0
    %787 = vmatprep.subr.bf16.mxu0 0
    %788 = vmatpush2.bf16.msra.mxu0 0
    %789 = vmatprep.subr.bf16.mxu0 0
    %790 = vmatpush2.bf16.msra.mxu0 0
    %791 = vmatprep.mubr.bf16.mxu0 0
    %792 = vmatmul.mubr.bf16.gmra.mxu0 %v290
    %v793 = vpop.f32.mrf.mxu0
    %v794 = vadd.f32 0.0, %v793
    %v795 = vpop.f32.mrf.mxu0
    %v796 = vpop.f32.mrf.mxu0
    %v797 = vadd.f32 0.0, %v796
    %v798 = vpop.f32.mrf.mxu0
    %799 = vmatprep.mubr.bf16.mxu0 0
    %800 = vmatmul.mubr.bf16.gmra.mxu0 %v293
    %v801 = vpop.f32.mrf.mxu0
    %v802 = vadd.f32 0.0, %v801
    %v803 = vpop.f32.mrf.mxu0
    %v804 = vpop.f32.mrf.mxu0
    %v805 = vadd.f32 0.0, %v804
    %v806 = vpop.f32.mrf.mxu0
    %807 = vdwg.mxu0
    %v808 = vadd.f32 %v735, %v794
    %v809 = vadd.f32 %v738, %v797
    %v810 = vadd.f32 %v743, %v802
    %v811 = vadd.f32 %v746, %v805
    %812 = vrot.lane.b32.xlu0 %v749, 64
    %v813 = vpop.permute.xlu0 %812
    %814 = vrot.lane.b32.xlu0 %v750, 64
    %v815 = vpop.permute.xlu0 %814
    %818 = vmatprep.subr.bf16.mxu0 0
    %819 = vmatpush1.bf16.msra.mxu0 0
    %820 = vmatprep.subr.bf16.mxu0 0
    %821 = vmatpush1.bf16.msra.mxu0 0
    %822 = vmatprep.subr.bf16.mxu0 0
    %823 = vmatpush1.bf16.msra.mxu0 0
    %824 = vmatprep.subr.bf16.mxu0 0
    %825 = vmatpush1.bf16.msra.mxu0 0
    %826 = vmatprep.subr.bf16.mxu0 0
    %827 = vmatpush1.bf16.msra.mxu0 0
    %828 = vmatprep.subr.bf16.mxu0 0
    %829 = vmatpush1.bf16.msra.mxu0 0
    %830 = vmatprep.subr.bf16.mxu0 0
    %831 = vmatpush1.bf16.msra.mxu0 %v815
    %832 = vmatprep.subr.bf16.mxu0 0
    %833 = vmatpush1.bf16.msra.mxu0 %v813
    %834 = vmatprep.subr.bf16.mxu0 0
    %835 = vmatpush2.bf16.msra.mxu0 0
    %836 = vmatprep.subr.bf16.mxu0 0
    %837 = vmatpush2.bf16.msra.mxu0 0
    %838 = vmatprep.subr.bf16.mxu0 0
    %839 = vmatpush2.bf16.msra.mxu0 0
    %840 = vmatprep.subr.bf16.mxu0 0
    %841 = vmatpush2.bf16.msra.mxu0 0
    %842 = vmatprep.subr.bf16.mxu0 0
    %843 = vmatpush2.bf16.msra.mxu0 0
    %844 = vmatprep.subr.bf16.mxu0 0
    %845 = vmatpush2.bf16.msra.mxu0 0
    %846 = vmatprep.subr.bf16.mxu0 0
    %847 = vmatpush2.bf16.msra.mxu0 0
    %848 = vmatprep.subr.bf16.mxu0 0
    %849 = vmatpush2.bf16.msra.mxu0 0
    %850 = vmatprep.mubr.bf16.mxu0 0
    %851 = vmatmul.mubr.bf16.gmra.mxu0 %v370
    %v852 = vpop.f32.mrf.mxu0
    %v853 = vadd.f32 0.0, %v852
    %v854 = vpop.f32.mrf.mxu0
    %v855 = vpop.f32.mrf.mxu0
    %v856 = vadd.f32 0.0, %v855
    %v857 = vpop.f32.mrf.mxu0
    %858 = vmatprep.mubr.bf16.mxu0 0
    %859 = vmatmul.mubr.bf16.gmra.mxu0 %v373
    %v860 = vpop.f32.mrf.mxu0
    %v861 = vadd.f32 0.0, %v860
    %v862 = vpop.f32.mrf.mxu0
    %v863 = vpop.f32.mrf.mxu0
    %v864 = vadd.f32 0.0, %v863
    %v865 = vpop.f32.mrf.mxu0
    %866 = vdwg.mxu0
    %v867 = vadd.f32 %v808, %v853
    %v868 = vadd.f32 %v809, %v856
    %v869 = vadd.f32 %v810, %v861
    %v870 = vadd.f32 %v811, %v864
    %871 = vrot.lane.b32.xlu0 %v749, 32
    %v872 = vpop.permute.xlu0 %871
    %873 = vrot.lane.b32.xlu0 %v750, 32
    %v874 = vpop.permute.xlu0 %873
    %877 = vmatprep.subr.bf16.mxu0 0
    %878 = vmatpush1.bf16.msra.mxu0 0
    %879 = vmatprep.subr.bf16.mxu0 0
    %880 = vmatpush1.bf16.msra.mxu0 0
    %881 = vmatprep.subr.bf16.mxu0 0
    %882 = vmatpush1.bf16.msra.mxu0 0
    %883 = vmatprep.subr.bf16.mxu0 0
    %884 = vmatpush1.bf16.msra.mxu0 0
    %885 = vmatprep.subr.bf16.mxu0 0
    %886 = vmatpush1.bf16.msra.mxu0 0
    %887 = vmatprep.subr.bf16.mxu0 0
    %888 = vmatpush1.bf16.msra.mxu0 0
    %889 = vmatprep.subr.bf16.mxu0 0
    %890 = vmatpush1.bf16.msra.mxu0 %v874
    %891 = vmatprep.subr.bf16.mxu0 0
    %892 = vmatpush1.bf16.msra.mxu0 %v872
    %893 = vmatprep.subr.bf16.mxu0 0
    %894 = vmatpush2.bf16.msra.mxu0 0
    %895 = vmatprep.subr.bf16.mxu0 0
    %896 = vmatpush2.bf16.msra.mxu0 0
    %897 = vmatprep.subr.bf16.mxu0 0
    %898 = vmatpush2.bf16.msra.mxu0 0
    %899 = vmatprep.subr.bf16.mxu0 0
    %900 = vmatpush2.bf16.msra.mxu0 0
    %901 = vmatprep.subr.bf16.mxu0 0
    %902 = vmatpush2.bf16.msra.mxu0 0
    %903 = vmatprep.subr.bf16.mxu0 0
    %904 = vmatpush2.bf16.msra.mxu0 0
    %905 = vmatprep.subr.bf16.mxu0 0
    %906 = vmatpush2.bf16.msra.mxu0 0
    %907 = vmatprep.subr.bf16.mxu0 0
    %908 = vmatpush2.bf16.msra.mxu0 0
    %909 = vmatprep.mubr.bf16.mxu0 0
    %910 = vmatmul.mubr.bf16.gmra.mxu0 %v450
    %v911 = vpop.f32.mrf.mxu0
    %v912 = vadd.f32 0.0, %v911
    %v913 = vpop.f32.mrf.mxu0
    %v914 = vpop.f32.mrf.mxu0
    %v915 = vadd.f32 0.0, %v914
    %v916 = vpop.f32.mrf.mxu0
    %917 = vmatprep.mubr.bf16.mxu0 0
    %918 = vmatmul.mubr.bf16.gmra.mxu0 %v453
    %v919 = vpop.f32.mrf.mxu0
    %v920 = vadd.f32 0.0, %v919
    %v921 = vpop.f32.mrf.mxu0
    %v922 = vpop.f32.mrf.mxu0
    %v923 = vadd.f32 0.0, %v922
    %v924 = vpop.f32.mrf.mxu0
    %925 = vdwg.mxu0
    %v926 = vadd.f32 %v867, %v912
    %v927 = vadd.f32 %v868, %v915
    %v928 = vadd.f32 %v869, %v920
    %v929 = vadd.f32 %v870, %v923
    %v930 = vmul.f32 %v926, 0.25
    %v931 = vmul.f32 %v927, 0.25
    %v932 = vmul.f32 %v928, 0.25
    %v933 = vmul.f32 %v929, 0.25
    %v934 = vadd.f32 %v930, %v512
    %v935 = vadd.f32 %v931, %v513
    %v936 = vadd.f32 %v932, %v514
    %v937 = vadd.f32 %v933, %v515
    %v938 = vpack.c.bf16 %v935, %v934
    %v939 = vpack.c.bf16 %v937, %v936
    %s940 = scalar_lea.vmem %s3, 32
    %v941 = vld [vmem:[%s940] sm:$0xf]
    %v942 = vld [vmem:[%s940 + $0x4] sm:$0xf]
    %v943 = vld [vmem:[%s940 + $0x8] sm:$0xf]
    %v944 = vld [vmem:[%s940 + $0xc] sm:$0xf]
    %s945 = scalar_lea.vmem %s2, 64
    %v946 = vld [vmem:[%s945] sm:$0xff]
    %v947 = vld [vmem:[%s945 + $0x8] sm:$0xff]
    %v948 = vld [vmem:[%s945 + $0x10] sm:$0xff]
    %v949 = vld [vmem:[%s945 + $0x18] sm:$0xff]
    %v954 = vunpack.c.l.b16 %v941
    %v955 = vunpack.c.l.b16 %v942
    %v956 = vunpack.c.l.b16 %v943
    %v957 = vunpack.c.l.b16 %v944
    %v958 = vpack.c.b16 %v955, %v954
    %v959 = vpack.c.b16 %v957, %v956
    %v963 = vsel %vm57, %v938, 0
    %v966 = vsel %vm57, %v939, 0
    %968 = vmatprep.subr.bf16.mxu0 0
    %969 = vmatpush1.bf16.msra.mxu0 0
    %970 = vmatprep.subr.bf16.mxu0 0
    %971 = vmatpush1.bf16.msra.mxu0 0
    %972 = vmatprep.subr.bf16.mxu0 0
    %973 = vmatpush1.bf16.msra.mxu0 0
    %974 = vmatprep.subr.bf16.mxu0 0
    %975 = vmatpush1.bf16.msra.mxu0 0
    %976 = vmatprep.subr.bf16.mxu0 0
    %977 = vmatpush1.bf16.msra.mxu0 0
    %978 = vmatprep.subr.bf16.mxu0 0
    %979 = vmatpush1.bf16.msra.mxu0 0
    %980 = vmatprep.subr.bf16.mxu0 0
    %981 = vmatpush1.bf16.msra.mxu0 %v959
    %982 = vmatprep.subr.bf16.mxu0 0
    %983 = vmatpush1.bf16.msra.mxu0 %v958
    %984 = vmatprep.subr.bf16.mxu0 0
    %985 = vmatpush2.bf16.msra.mxu0 0
    %986 = vmatprep.subr.bf16.mxu0 0
    %987 = vmatpush2.bf16.msra.mxu0 0
    %988 = vmatprep.subr.bf16.mxu0 0
    %989 = vmatpush2.bf16.msra.mxu0 0
    %990 = vmatprep.subr.bf16.mxu0 0
    %991 = vmatpush2.bf16.msra.mxu0 0
    %992 = vmatprep.subr.bf16.mxu0 0
    %993 = vmatpush2.bf16.msra.mxu0 0
    %994 = vmatprep.subr.bf16.mxu0 0
    %995 = vmatpush2.bf16.msra.mxu0 0
    %996 = vmatprep.subr.bf16.mxu0 0
    %997 = vmatpush2.bf16.msra.mxu0 0
    %998 = vmatprep.subr.bf16.mxu0 0
    %999 = vmatpush2.bf16.msra.mxu0 0
    %1000 = vmatprep.mubr.bf16.mxu0 0
    %1001 = vmatmul.mubr.bf16.gmra.mxu0 %v963
    %v1002 = vpop.f32.mrf.mxu0
    %v1003 = vadd.f32 %v946, %v1002
    %v1004 = vpop.f32.mrf.mxu0
    %v1005 = vpop.f32.mrf.mxu0
    %v1006 = vadd.f32 %v947, %v1005
    %v1007 = vpop.f32.mrf.mxu0
    %1008 = vmatprep.mubr.bf16.mxu0 0
    %1009 = vmatmul.mubr.bf16.gmra.mxu0 %v966
    %v1010 = vpop.f32.mrf.mxu0
    %v1011 = vadd.f32 %v948, %v1010
    %v1012 = vpop.f32.mrf.mxu0
    %v1013 = vpop.f32.mrf.mxu0
    %v1014 = vadd.f32 %v949, %v1013
    %v1015 = vpop.f32.mrf.mxu0
    %1016 = vdwg.mxu0
    %v1017 = vsel %vm57, %v1003, 0.0
    %1018 = vadd.xlane.f32.xlu0 %v1017
    %v1019 = vpop.xlane.xlu0 %1018
    %v1020 = vsel %vm57, %v1006, 0.0
    %1021 = vadd.xlane.f32.xlu0 %v1020
    %v1022 = vpop.xlane.xlu0 %1021
    %v1023 = vsel %vm57, %v1011, 0.0
    %1024 = vadd.xlane.f32.xlu0 %v1023
    %v1025 = vpop.xlane.xlu0 %1024
    %v1026 = vsel %vm57, %v1014, 0.0
    %1027 = vadd.xlane.f32.xlu0 %v1026
    %v1028 = vpop.xlane.xlu0 %1027
    %v1029 = vmul.f32 %v1019, %v125
    %v1030 = vmul.f32 %v1022, %v125
    %v1031 = vmul.f32 %v1025, %v125
    %v1032 = vmul.f32 %v1028, %v125
    %v1033 = vsub.f32 %v1003, %v1029
    %v1034 = vsub.f32 %v1006, %v1030
    %v1035 = vsub.f32 %v1011, %v1031
    %v1036 = vsub.f32 %v1014, %v1032
    %v1037 = vmul.f32 %v1033, %v1033
    %v1038 = vmul.f32 %v1034, %v1034
    %v1039 = vmul.f32 %v1035, %v1035
    %v1040 = vmul.f32 %v1036, %v1036
    %v1041 = vsel %vm57, %v1037, 0.0
    %1042 = vadd.xlane.f32.xlu0 %v1041
    %v1043 = vpop.xlane.xlu0 %1042
    %v1044 = vsel %vm57, %v1038, 0.0
    %1045 = vadd.xlane.f32.xlu0 %v1044
    %v1046 = vpop.xlane.xlu0 %1045
    %v1047 = vsel %vm57, %v1039, 0.0
    %1048 = vadd.xlane.f32.xlu0 %v1047
    %v1049 = vpop.xlane.xlu0 %1048
    %v1050 = vsel %vm57, %v1040, 0.0
    %1051 = vadd.xlane.f32.xlu0 %v1050
    %v1052 = vpop.xlane.xlu0 %1051
    %v1053 = vmul.f32 %v1043, %v125
    %v1054 = vmul.f32 %v1046, %v125
    %v1055 = vmul.f32 %v1049, %v125
    %v1056 = vmul.f32 %v1052, %v125
    %v1057 = vadd.f32 %v1053, 1e-05
    %v1058 = vadd.f32 %v1054, 1e-05
    %v1059 = vadd.f32 %v1055, 1e-05
    %v1060 = vadd.f32 %v1056, 1e-05
    %v1061 = vrsqrt.pop %v1057
    %v1062 = vrsqrt.pop %v1058
    %v1063 = vrsqrt.pop %v1059
    %v1064 = vrsqrt.pop %v1060
    %v1065 = vmul.f32 %v1033, %v1061
    %v1066 = vmul.f32 %v1034, %v1062
    %v1067 = vmul.f32 %v1035, %v1063
    %v1068 = vmul.f32 %v1036, %v1064
    %s1069 = scalar_lea.vmem %s4, 2
    %v1070 = vld [vmem:[%s1069] sm:$0x1]
    %v1072 = vlaneseq
    %v1073 = vshrl.u32 %v1072, 7
    %v1074 = vsub.s32 0, %v1073
    %v1075 = vrot.slane %v1070, %v1074
    %v1077 = vmul.f32 %v1065, %v1075
    %v1078 = vmul.f32 %v1066, %v1075
    %v1079 = vmul.f32 %v1067, %v1075
    %v1080 = vmul.f32 %v1068, %v1075
    %s1081 = scalar_lea.vmem %s5, 2
    %v1082 = vld [vmem:[%s1081] sm:$0x1]
    %v1084 = vlaneseq
    %v1085 = vshrl.u32 %v1084, 7
    %v1086 = vsub.s32 0, %v1085
    %v1087 = vrot.slane %v1082, %v1086
    %v1089 = vadd.f32 %v1077, %v1087
    %v1090 = vadd.f32 %v1078, %v1087
    %v1091 = vadd.f32 %v1079, %v1087
    %v1092 = vadd.f32 %v1080, %v1087
    %v1093 = vtanh.pop %v1089
    %v1094 = vtanh.pop %v1090
    %v1095 = vtanh.pop %v1091
    %v1096 = vtanh.pop %v1092
    %v1097 = vpack.c.bf16 %v1094, %v1093
    %v1098 = vpack.c.bf16 %v1096, %v1095
    %s1099 = scalar_lea.vmem %s6, 32
    %v1100 = vld [vmem:[%s1099] sm:$0xf]
    %v1101 = vld [vmem:[%s1099 + $0x4] sm:$0xf]
    %v1102 = vld [vmem:[%s1099 + $0x8] sm:$0xf]
    %v1103 = vld [vmem:[%s1099 + $0xc] sm:$0xf]
    %v1108 = vunpack.c.l.b16 %v1100
    %v1109 = vunpack.c.l.b16 %v1101
    %v1110 = vunpack.c.l.b16 %v1102
    %v1111 = vunpack.c.l.b16 %v1103
    %v1112 = vpack.c.b16 %v1109, %v1108
    %v1113 = vpack.c.b16 %v1111, %v1110
    %v1117 = vsel %vm57, %v1097, 0
    %v1120 = vsel %vm57, %v1098, 0
    %1122 = vmatprep.subr.bf16.mxu0 0
    %1123 = vmatpush1.bf16.msra.mxu0 0
    %1124 = vmatprep.subr.bf16.mxu0 0
    %1125 = vmatpush1.bf16.msra.mxu0 0
    %1126 = vmatprep.subr.bf16.mxu0 0
    %1127 = vmatpush1.bf16.msra.mxu0 0
    %1128 = vmatprep.subr.bf16.mxu0 0
    %1129 = vmatpush1.bf16.msra.mxu0 0
    %1130 = vmatprep.subr.bf16.mxu0 0
    %1131 = vmatpush1.bf16.msra.mxu0 0
    %1132 = vmatprep.subr.bf16.mxu0 0
    %1133 = vmatpush1.bf16.msra.mxu0 0
    %1134 = vmatprep.subr.bf16.mxu0 0
    %1135 = vmatpush1.bf16.msra.mxu0 %v1113
    %1136 = vmatprep.subr.bf16.mxu0 0
    %1137 = vmatpush1.bf16.msra.mxu0 %v1112
    %1138 = vmatprep.subr.bf16.mxu0 0
    %1139 = vmatpush2.bf16.msra.mxu0 0
    %1140 = vmatprep.subr.bf16.mxu0 0
    %1141 = vmatpush2.bf16.msra.mxu0 0
    %1142 = vmatprep.subr.bf16.mxu0 0
    %1143 = vmatpush2.bf16.msra.mxu0 0
    %1144 = vmatprep.subr.bf16.mxu0 0
    %1145 = vmatpush2.bf16.msra.mxu0 0
    %1146 = vmatprep.subr.bf16.mxu0 0
    %1147 = vmatpush2.bf16.msra.mxu0 0
    %1148 = vmatprep.subr.bf16.mxu0 0
    %1149 = vmatpush2.bf16.msra.mxu0 0
    %1150 = vmatprep.subr.bf16.mxu0 0
    %1151 = vmatpush2.bf16.msra.mxu0 0
    %1152 = vmatprep.subr.bf16.mxu0 0
    %1153 = vmatpush2.bf16.msra.mxu0 0
    %1154 = vmatprep.mubr.bf16.mxu0 0
    %1155 = vmatmul.mubr.bf16.gmra.mxu0 %v1117
    %v1156 = vpop.f32.mrf.mxu0
    %v1157 = vadd.f32 0.0, %v1156
    %v1158 = vpop.f32.mrf.mxu0
    %v1159 = vpop.f32.mrf.mxu0
    %v1160 = vadd.f32 0.0, %v1159
    %v1161 = vpop.f32.mrf.mxu0
    %1162 = vmatprep.mubr.bf16.mxu0 0
    %1163 = vmatmul.mubr.bf16.gmra.mxu0 %v1120
    %v1164 = vpop.f32.mrf.mxu0
    %v1165 = vadd.f32 0.0, %v1164
    %v1166 = vpop.f32.mrf.mxu0
    %v1167 = vpop.f32.mrf.mxu0
    %v1168 = vadd.f32 0.0, %v1167
    %v1169 = vpop.f32.mrf.mxu0
    %1170 = vdwg.mxu0
    %v1171 = vpack.c.bf16 %v1160, %v1157
    %v1172 = vpack.c.bf16 %v1168, %v1165
    %1175 = vrot.lane.b32.xlu0 %v1171, 96
    %v1176 = vpop.permute.xlu0 %1175
    %1177 = vrot.lane.b32.xlu0 %v1172, 96
    %v1178 = vpop.permute.xlu0 %1177
    %1181 = vmatprep.subr.bf16.mxu0 0
    %1182 = vmatpush1.bf16.msra.mxu0 0
    %1183 = vmatprep.subr.bf16.mxu0 0
    %1184 = vmatpush1.bf16.msra.mxu0 0
    %1185 = vmatprep.subr.bf16.mxu0 0
    %1186 = vmatpush1.bf16.msra.mxu0 0
    %1187 = vmatprep.subr.bf16.mxu0 0
    %1188 = vmatpush1.bf16.msra.mxu0 0
    %1189 = vmatprep.subr.bf16.mxu0 0
    %1190 = vmatpush1.bf16.msra.mxu0 0
    %1191 = vmatprep.subr.bf16.mxu0 0
    %1192 = vmatpush1.bf16.msra.mxu0 0
    %1193 = vmatprep.subr.bf16.mxu0 0
    %1194 = vmatpush1.bf16.msra.mxu0 %v1178
    %1195 = vmatprep.subr.bf16.mxu0 0
    %1196 = vmatpush1.bf16.msra.mxu0 %v1176
    %1197 = vmatprep.subr.bf16.mxu0 0
    %1198 = vmatpush2.bf16.msra.mxu0 0
    %1199 = vmatprep.subr.bf16.mxu0 0
    %1200 = vmatpush2.bf16.msra.mxu0 0
    %1201 = vmatprep.subr.bf16.mxu0 0
    %1202 = vmatpush2.bf16.msra.mxu0 0
    %1203 = vmatprep.subr.bf16.mxu0 0
    %1204 = vmatpush2.bf16.msra.mxu0 0
    %1205 = vmatprep.subr.bf16.mxu0 0
    %1206 = vmatpush2.bf16.msra.mxu0 0
    %1207 = vmatprep.subr.bf16.mxu0 0
    %1208 = vmatpush2.bf16.msra.mxu0 0
    %1209 = vmatprep.subr.bf16.mxu0 0
    %1210 = vmatpush2.bf16.msra.mxu0 0
    %1211 = vmatprep.subr.bf16.mxu0 0
    %1212 = vmatpush2.bf16.msra.mxu0 0
    %1213 = vmatprep.mubr.bf16.mxu0 0
    %1214 = vmatmul.mubr.bf16.gmra.mxu0 %v290
    %v1215 = vpop.f32.mrf.mxu0
    %v1216 = vadd.f32 0.0, %v1215
    %v1217 = vpop.f32.mrf.mxu0
    %v1218 = vpop.f32.mrf.mxu0
    %v1219 = vadd.f32 0.0, %v1218
    %v1220 = vpop.f32.mrf.mxu0
    %1221 = vmatprep.mubr.bf16.mxu0 0
    %1222 = vmatmul.mubr.bf16.gmra.mxu0 %v293
    %v1223 = vpop.f32.mrf.mxu0
    %v1224 = vadd.f32 0.0, %v1223
    %v1225 = vpop.f32.mrf.mxu0
    %v1226 = vpop.f32.mrf.mxu0
    %v1227 = vadd.f32 0.0, %v1226
    %v1228 = vpop.f32.mrf.mxu0
    %1229 = vdwg.mxu0
    %v1230 = vadd.f32 %v1157, %v1216
    %v1231 = vadd.f32 %v1160, %v1219
    %v1232 = vadd.f32 %v1165, %v1224
    %v1233 = vadd.f32 %v1168, %v1227
    %1234 = vrot.lane.b32.xlu0 %v1171, 64
    %v1235 = vpop.permute.xlu0 %1234
    %1236 = vrot.lane.b32.xlu0 %v1172, 64
    %v1237 = vpop.permute.xlu0 %1236
    %1240 = vmatprep.subr.bf16.mxu0 0
    %1241 = vmatpush1.bf16.msra.mxu0 0
    %1242 = vmatprep.subr.bf16.mxu0 0
    %1243 = vmatpush1.bf16.msra.mxu0 0
    %1244 = vmatprep.subr.bf16.mxu0 0
    %1245 = vmatpush1.bf16.msra.mxu0 0
    %1246 = vmatprep.subr.bf16.mxu0 0
    %1247 = vmatpush1.bf16.msra.mxu0 0
    %1248 = vmatprep.subr.bf16.mxu0 0
    %1249 = vmatpush1.bf16.msra.mxu0 0
    %1250 = vmatprep.subr.bf16.mxu0 0
    %1251 = vmatpush1.bf16.msra.mxu0 0
    %1252 = vmatprep.subr.bf16.mxu0 0
    %1253 = vmatpush1.bf16.msra.mxu0 %v1237
    %1254 = vmatprep.subr.bf16.mxu0 0
    %1255 = vmatpush1.bf16.msra.mxu0 %v1235
    %1256 = vmatprep.subr.bf16.mxu0 0
    %1257 = vmatpush2.bf16.msra.mxu0 0
    %1258 = vmatprep.subr.bf16.mxu0 0
    %1259 = vmatpush2.bf16.msra.mxu0 0
    %1260 = vmatprep.subr.bf16.mxu0 0
    %1261 = vmatpush2.bf16.msra.mxu0 0
    %1262 = vmatprep.subr.bf16.mxu0 0
    %1263 = vmatpush2.bf16.msra.mxu0 0
    %1264 = vmatprep.subr.bf16.mxu0 0
    %1265 = vmatpush2.bf16.msra.mxu0 0
    %1266 = vmatprep.subr.bf16.mxu0 0
    %1267 = vmatpush2.bf16.msra.mxu0 0
    %1268 = vmatprep.subr.bf16.mxu0 0
    %1269 = vmatpush2.bf16.msra.mxu0 0
    %1270 = vmatprep.subr.bf16.mxu0 0
    %1271 = vmatpush2.bf16.msra.mxu0 0
    %1272 = vmatprep.mubr.bf16.mxu0 0
    %1273 = vmatmul.mubr.bf16.gmra.mxu0 %v370
    %v1274 = vpop.f32.mrf.mxu0
    %v1275 = vadd.f32 0.0, %v1274
    %v1276 = vpop.f32.mrf.mxu0
    %v1277 = vpop.f32.mrf.mxu0
    %v1278 = vadd.f32 0.0, %v1277
    %v1279 = vpop.f32.mrf.mxu0
    %1280 = vmatprep.mubr.bf16.mxu0 0
    %1281 = vmatmul.mubr.bf16.gmra.mxu0 %v373
    %v1282 = vpop.f32.mrf.mxu0
    %v1283 = vadd.f32 0.0, %v1282
    %v1284 = vpop.f32.mrf.mxu0
    %v1285 = vpop.f32.mrf.mxu0
    %v1286 = vadd.f32 0.0, %v1285
    %v1287 = vpop.f32.mrf.mxu0
    %1288 = vdwg.mxu0
    %v1289 = vadd.f32 %v1230, %v1275
    %v1290 = vadd.f32 %v1231, %v1278
    %v1291 = vadd.f32 %v1232, %v1283
    %v1292 = vadd.f32 %v1233, %v1286
    %1293 = vrot.lane.b32.xlu0 %v1171, 32
    %v1294 = vpop.permute.xlu0 %1293
    %1295 = vrot.lane.b32.xlu0 %v1172, 32
    %v1296 = vpop.permute.xlu0 %1295
    %1299 = vmatprep.subr.bf16.mxu0 0
    %1300 = vmatpush1.bf16.msra.mxu0 0
    %1301 = vmatprep.subr.bf16.mxu0 0
    %1302 = vmatpush1.bf16.msra.mxu0 0
    %1303 = vmatprep.subr.bf16.mxu0 0
    %1304 = vmatpush1.bf16.msra.mxu0 0
    %1305 = vmatprep.subr.bf16.mxu0 0
    %1306 = vmatpush1.bf16.msra.mxu0 0
    %1307 = vmatprep.subr.bf16.mxu0 0
    %1308 = vmatpush1.bf16.msra.mxu0 0
    %1309 = vmatprep.subr.bf16.mxu0 0
    %1310 = vmatpush1.bf16.msra.mxu0 0
    %1311 = vmatprep.subr.bf16.mxu0 0
    %1312 = vmatpush1.bf16.msra.mxu0 %v1296
    %1313 = vmatprep.subr.bf16.mxu0 0
    %1314 = vmatpush1.bf16.msra.mxu0 %v1294
    %1315 = vmatprep.subr.bf16.mxu0 0
    %1316 = vmatpush2.bf16.msra.mxu0 0
    %1317 = vmatprep.subr.bf16.mxu0 0
    %1318 = vmatpush2.bf16.msra.mxu0 0
    %1319 = vmatprep.subr.bf16.mxu0 0
    %1320 = vmatpush2.bf16.msra.mxu0 0
    %1321 = vmatprep.subr.bf16.mxu0 0
    %1322 = vmatpush2.bf16.msra.mxu0 0
    %1323 = vmatprep.subr.bf16.mxu0 0
    %1324 = vmatpush2.bf16.msra.mxu0 0
    %1325 = vmatprep.subr.bf16.mxu0 0
    %1326 = vmatpush2.bf16.msra.mxu0 0
    %1327 = vmatprep.subr.bf16.mxu0 0
    %1328 = vmatpush2.bf16.msra.mxu0 0
    %1329 = vmatprep.subr.bf16.mxu0 0
    %1330 = vmatpush2.bf16.msra.mxu0 0
    %1331 = vmatprep.mubr.bf16.mxu0 0
    %1332 = vmatmul.mubr.bf16.gmra.mxu0 %v450
    %v1333 = vpop.f32.mrf.mxu0
    %v1334 = vadd.f32 0.0, %v1333
    %v1335 = vpop.f32.mrf.mxu0
    %v1336 = vpop.f32.mrf.mxu0
    %v1337 = vadd.f32 0.0, %v1336
    %v1338 = vpop.f32.mrf.mxu0
    %1339 = vmatprep.mubr.bf16.mxu0 0
    %1340 = vmatmul.mubr.bf16.gmra.mxu0 %v453
    %v1341 = vpop.f32.mrf.mxu0
    %v1342 = vadd.f32 0.0, %v1341
    %v1343 = vpop.f32.mrf.mxu0
    %v1344 = vpop.f32.mrf.mxu0
    %v1345 = vadd.f32 0.0, %v1344
    %v1346 = vpop.f32.mrf.mxu0
    %1347 = vdwg.mxu0
    %v1348 = vadd.f32 %v1289, %v1334
    %v1349 = vadd.f32 %v1290, %v1337
    %v1350 = vadd.f32 %v1291, %v1342
    %v1351 = vadd.f32 %v1292, %v1345
    %v1352 = vmul.f32 %v1348, 0.25
    %v1353 = vmul.f32 %v1349, 0.25
    %v1354 = vmul.f32 %v1350, 0.25
    %v1355 = vmul.f32 %v1351, 0.25
    %v1356 = vadd.f32 %v1352, %v934
    %v1357 = vadd.f32 %v1353, %v935
    %v1358 = vadd.f32 %v1354, %v936
    %v1359 = vadd.f32 %v1355, %v937
    %v1360 = vpack.c.bf16 %v1357, %v1356
    %v1361 = vpack.c.bf16 %v1359, %v1358
    %v1362 = vld [vmem:[%s7] sm:$0xf]
    %v1363 = vld [vmem:[%s7 + $0x4] sm:$0xf]
    %v1364 = vld [vmem:[%s7 + $0x8] sm:$0xf]
    %v1365 = vld [vmem:[%s7 + $0xc] sm:$0xf]
    %v1370 = vunpack.c.l.b16 %v1362
    %v1371 = vunpack.c.l.b16 %v1363
    %v1372 = vunpack.c.l.b16 %v1364
    %v1373 = vunpack.c.l.b16 %v1365
    %v1374 = vpack.c.b16 %v1371, %v1370
    %v1375 = vpack.c.b16 %v1373, %v1372
    %v1379 = vsel %vm57, %v1360, 0
    %v1382 = vsel %vm57, %v1361, 0
    %1384 = vmatprep.subr.bf16.mxu0 0
    %1385 = vmatpush1.bf16.msra.mxu0 0
    %1386 = vmatprep.subr.bf16.mxu0 0
    %1387 = vmatpush1.bf16.msra.mxu0 0
    %1388 = vmatprep.subr.bf16.mxu0 0
    %1389 = vmatpush1.bf16.msra.mxu0 0
    %1390 = vmatprep.subr.bf16.mxu0 0
    %1391 = vmatpush1.bf16.msra.mxu0 0
    %1392 = vmatprep.subr.bf16.mxu0 0
    %1393 = vmatpush1.bf16.msra.mxu0 0
    %1394 = vmatprep.subr.bf16.mxu0 0
    %1395 = vmatpush1.bf16.msra.mxu0 0
    %1396 = vmatprep.subr.bf16.mxu0 0
    %1397 = vmatpush1.bf16.msra.mxu0 %v1375
    %1398 = vmatprep.subr.bf16.mxu0 0
    %1399 = vmatpush1.bf16.msra.mxu0 %v1374
    %1400 = vmatprep.subr.bf16.mxu0 0
    %1401 = vmatpush2.bf16.msra.mxu0 0
    %1402 = vmatprep.subr.bf16.mxu0 0
    %1403 = vmatpush2.bf16.msra.mxu0 0
    %1404 = vmatprep.subr.bf16.mxu0 0
    %1405 = vmatpush2.bf16.msra.mxu0 0
    %1406 = vmatprep.subr.bf16.mxu0 0
    %1407 = vmatpush2.bf16.msra.mxu0 0
    %1408 = vmatprep.subr.bf16.mxu0 0
    %1409 = vmatpush2.bf16.msra.mxu0 0
    %1410 = vmatprep.subr.bf16.mxu0 0
    %1411 = vmatpush2.bf16.msra.mxu0 0
    %1412 = vmatprep.subr.bf16.mxu0 0
    %1413 = vmatpush2.bf16.msra.mxu0 0
    %1414 = vmatprep.subr.bf16.mxu0 0
    %1415 = vmatpush2.bf16.msra.mxu0 0
    %1416 = vmatprep.mubr.bf16.mxu0 0
    %1417 = vmatmul.mubr.bf16.gmra.mxu0 %v1379
    %v1418 = vpop.f32.mrf.mxu0
    %v1419 = vadd.f32 0.0, %v1418
    %v1420 = vpop.f32.mrf.mxu0
    %v1421 = vpop.f32.mrf.mxu0
    %v1422 = vadd.f32 0.0, %v1421
    %v1423 = vpop.f32.mrf.mxu0
    %1424 = vmatprep.mubr.bf16.mxu0 0
    %1425 = vmatmul.mubr.bf16.gmra.mxu0 %v1382
    %v1426 = vpop.f32.mrf.mxu0
    %v1427 = vadd.f32 0.0, %v1426
    %v1428 = vpop.f32.mrf.mxu0
    %v1429 = vpop.f32.mrf.mxu0
    %v1430 = vadd.f32 0.0, %v1429
    %v1431 = vpop.f32.mrf.mxu0
    %1432 = vdwg.mxu0
    %v1433 = vpack.c.bf16 %v1422, %v1419
    %v1434 = vpack.c.bf16 %v1430, %v1427
    %v1436 = vsel %vm57, %v1433, 0
    %1438 = vmatprep.subr.bf16.mxu0 0
    %1439 = vmatpush1.bf16.xpose.msra.mxu0 0
    %1440 = vmatprep.subr.bf16.mxu0 0
    %1441 = vmatpush1.bf16.xpose.msra.mxu0 0
    %1442 = vmatprep.subr.bf16.mxu0 0
    %1443 = vmatpush1.bf16.xpose.msra.mxu0 0
    %1444 = vmatprep.subr.bf16.mxu0 0
    %1445 = vmatpush1.bf16.xpose.msra.mxu0 0
    %1446 = vmatprep.subr.bf16.mxu0 0
    %1447 = vmatpush1.bf16.xpose.msra.mxu0 0
    %1448 = vmatprep.subr.bf16.mxu0 0
    %1449 = vmatpush1.bf16.xpose.msra.mxu0 0
    %1450 = vmatprep.subr.bf16.mxu0 0
    %1451 = vmatpush1.bf16.xpose.msra.mxu0 0
    %1452 = vmatprep.subr.bf16.mxu0 0
    %1453 = vmatpush1.bf16.xpose.msra.mxu0 %v1379
    %1454 = vmatprep.subr.bf16.mxu0 0
    %1455 = vmatpush2.bf16.xpose.msra.mxu0 0
    %1456 = vmatprep.subr.bf16.mxu0 0
    %1457 = vmatpush2.bf16.xpose.msra.mxu0 0
    %1458 = vmatprep.subr.bf16.mxu0 0
    %1459 = vmatpush2.bf16.xpose.msra.mxu0 0
    %1460 = vmatprep.subr.bf16.mxu0 0
    %1461 = vmatpush2.bf16.xpose.msra.mxu0 0
    %1462 = vmatprep.subr.bf16.mxu0 0
    %1463 = vmatpush2.bf16.xpose.msra.mxu0 0
    %1464 = vmatprep.subr.bf16.mxu0 0
    %1465 = vmatpush2.bf16.xpose.msra.mxu0 0
    %1466 = vmatprep.subr.bf16.mxu0 0
    %1467 = vmatpush2.bf16.xpose.msra.mxu0 0
    %1468 = vmatprep.subr.bf16.mxu0 0
    %1469 = vmatpush2.bf16.xpose.msra.mxu0 0
    %1470 = vmatprep.mubr.bf16.mxu0 0
    %1471 = vmatmul.mubr.bf16.gmra.mxu0 %v1436
    %v1472 = vpop.f32.mrf.mxu0
    %v1473 = vadd.f32 0.0, %v1472
    %v1474 = vpop.f32.mrf.mxu0
    %v1475 = vpop.f32.mrf.mxu0
    %v1476 = vadd.f32 0.0, %v1475
    %v1477 = vpop.f32.mrf.mxu0
    %1478 = vdwg.mxu0
    %v1479 = vxor.u32 %v1473, 2147483648
    %v1480 = vxor.u32 %v1476, 2147483648
    %v1481 = vmul.f32 %v1479, 1.442695
    %v1482 = vpow.pop %v1481
    %v1483 = vmul.f32 %v1480, 1.442695
    %v1484 = vpow.pop %v1483
    %v1485 = vadd.f32 %v1482, 1.0
    %v1486 = vadd.f32 %v1484, 1.0
    %v1487 = vrcp.pop %v1485
    %v1488 = vmul.f32 1.0, %v1487
    %v1489 = vrcp.pop %v1486
    %v1490 = vmul.f32 1.0, %v1489
    %vm1491 = vcmask 130048
    %1492 = vst.msk [vmem:[#allocation2] sm:$0xff] %vm1491, %v1488
    %1493 = vst.msk [vmem:[#allocation2 + $0x8] sm:$0xff] %vm1491, %v1490
    %v1495 = vsel %vm57, %v1434, 0
    %1497 = vmatprep.subr.bf16.mxu0 0
    %1498 = vmatpush1.bf16.xpose.msra.mxu0 0
    %1499 = vmatprep.subr.bf16.mxu0 0
    %1500 = vmatpush1.bf16.xpose.msra.mxu0 0
    %1501 = vmatprep.subr.bf16.mxu0 0
    %1502 = vmatpush1.bf16.xpose.msra.mxu0 0
    %1503 = vmatprep.subr.bf16.mxu0 0
    %1504 = vmatpush1.bf16.xpose.msra.mxu0 0
    %1505 = vmatprep.subr.bf16.mxu0 0
    %1506 = vmatpush1.bf16.xpose.msra.mxu0 0
    %1507 = vmatprep.subr.bf16.mxu0 0
    %1508 = vmatpush1.bf16.xpose.msra.mxu0 0
    %1509 = vmatprep.subr.bf16.mxu0 0
    %1510 = vmatpush1.bf16.xpose.msra.mxu0 0
    %1511 = vmatprep.subr.bf16.mxu0 0
    %1512 = vmatpush1.bf16.xpose.msra.mxu0 %v1382
    %1513 = vmatprep.subr.bf16.mxu0 0
    %1514 = vmatpush2.bf16.xpose.msra.mxu0 0
    %1515 = vmatprep.subr.bf16.mxu0 0
    %1516 = vmatpush2.bf16.xpose.msra.mxu0 0
    %1517 = vmatprep.subr.bf16.mxu0 0
    %1518 = vmatpush2.bf16.xpose.msra.mxu0 0
    %1519 = vmatprep.subr.bf16.mxu0 0
    %1520 = vmatpush2.bf16.xpose.msra.mxu0 0
    %1521 = vmatprep.subr.bf16.mxu0 0
    %1522 = vmatpush2.bf16.xpose.msra.mxu0 0
    %1523 = vmatprep.subr.bf16.mxu0 0
    %1524 = vmatpush2.bf16.xpose.msra.mxu0 0
    %1525 = vmatprep.subr.bf16.mxu0 0
    %1526 = vmatpush2.bf16.xpose.msra.mxu0 0
    %1527 = vmatprep.subr.bf16.mxu0 0
    %1528 = vmatpush2.bf16.xpose.msra.mxu0 0
    %1529 = vmatprep.mubr.bf16.mxu0 0
    %1530 = vmatmul.mubr.bf16.gmra.mxu0 %v1495
    %v1531 = vpop.f32.mrf.mxu0
    %v1532 = vadd.f32 0.0, %v1531
    %v1533 = vpop.f32.mrf.mxu0
    %v1534 = vpop.f32.mrf.mxu0
    %v1535 = vadd.f32 0.0, %v1534
    %v1536 = vpop.f32.mrf.mxu0
    %1537 = vdwg.mxu0
    %v1538 = vxor.u32 %v1532, 2147483648
    %v1539 = vxor.u32 %v1535, 2147483648
    %v1540 = vmul.f32 %v1538, 1.442695
    %v1541 = vpow.pop %v1540
    %v1542 = vmul.f32 %v1539, 1.442695
    %v1543 = vpow.pop %v1542
    %v1544 = vadd.f32 %v1541, 1.0
    %v1545 = vadd.f32 %v1543, 1.0
    %v1546 = vrcp.pop %v1544
    %v1547 = vmul.f32 1.0, %v1546
    %v1548 = vrcp.pop %v1545
    %v1549 = vmul.f32 1.0, %v1548
    %1550 = vst.msk [vmem:[#allocation2 + $0x10] sm:$0xff] %vm1491, %v1547
    %1551 = vst.msk [vmem:[#allocation2 + $0x18] sm:$0xff] %vm1491, %v1549
    // Predicated region
    $region34: #{sgcn_forward.1} parent=1 // pred_check
      _
    $region35: #{sgcn_forward.1} parent=1 // pred_check_branch
      %1553 = sbr.rel (0) target = $region37
    $region36: #{sgcn_forward.1} parent=1 // pred_region
      %s1555 = ssub.s32 512, 512
      %1556 = vsyncadd [#allocation3], %s1555
      %s1557 = sshll.u32 [#allocation2], 4
      %s1558 = int_to_ptr.vmem [resolvable:$true] %s1557
      %1563 = dma.vmem_to_hbm [thread:$0]  %s1558, 512, %s8, [#allocation3], 128, 128, 8
    $region37: #{sgcn_forward.1} parent=1 // pred_fallthru
      _
    // Predicated region
    $region38: #{sgcn_forward.1} parent=1 // pred_check
      _
    $region39: #{sgcn_forward.1} parent=1 // pred_check_branch
      %1565 = sbr.rel (0) target = $region41
    $region40: #{sgcn_forward.1} parent=1 // pred_region
      %1566 = dma.done [#allocation3], 512
    $region41: #{sgcn_forward.1} parent=1 // pred_fallthru
      _
    %1567 = vsyncpa [#allocation3], 1

</llo_original>
